<compile_context>
chip_gen: v7x
topology: tpu7x:2x2x1
jax: 0.10.0
libtpu: 0.0.40
codegen_flags: <defaults>
</compile_context>

<pallas_src>
import math

import jax
import jax.numpy as jnp
from jax.experimental import pallas as pl
from jax.experimental.pallas import tpu as pltpu

# ----------------------------- model hyper-params -----------------------------
C1 = 4          # input channels
C2 = 32         # embed dim / output channels
NUM_HEADS = 4
HEAD_DIM = C2 // NUM_HEADS
NUM_LAYERS = 2
BN_EPS = 1e-5

B, W, H = 2, 4, 4      # batch, spatial
L = W * H              # sequence length after flatten(2)


# ----------------------------- fused Pallas kernel -----------------------------
def make_fused_kernel(has_conv, num_layers, batch, seqlen):
    """Whole TransformerBlock forward in a single grid=() pallas_call."""
    n_tok = batch * seqlen
    neg_big = -1e30
    bf16 = jnp.bfloat16

    def kernel(*refs):
        i = 0
        x_ref = refs[i]; i += 1                       # (batch, C_in, seqlen)
        if has_conv:
            wc_ref, bc_ref = refs[i], refs[i + 1]; i += 2
        wl_ref, bl_ref = refs[i], refs[i + 1]; i += 2
        wqkv_ref, bqkv_ref, wo_ref, bo_ref, wffn_ref = refs[i:i + 5]; i += 5
        o_ref = refs[i]                               # (batch, C2, seqlen)

        # ---- fused input relayout + embed, channels-first ----
        # lane-concat batches: (C_in, batch*seqlen), columns ordered (b, l)
        x_cf = jnp.concatenate([x_ref[bb] for bb in range(batch)], axis=1)
        if has_conv:
            # 1x1 conv + folded BN (eval):  (C2,C1) @ (C1,N) -> (C2,N), bf16 MXU, f32 acc
            z = jnp.dot(wc_ref[...], x_cf.astype(bf16),
                        preferred_element_type=jnp.float32) + bc_ref[...]
            # SiLU with stable sigmoid: sigmoid(z) = 0.5*(1+tanh(z/2))  (f32, EUP tanh)
            p_cf = z * (0.5 * (jnp.tanh(0.5 * z) + 1.0))
        else:
            p_cf = x_cf.astype(jnp.float32)
        # single square transpose to token-major layout: (N, C2), rows (b, l)-ordered
        p = p_cf.T

        # linear(p) + p  (residual embed)
        x2 = p + jnp.dot(p.astype(bf16), wl_ref[...],
                         preferred_element_type=jnp.float32) + bl_ref[...]

        # ---- cross-batch additive mask (block-diagonal), built once, hoisted ----
        r = jax.lax.broadcasted_iota(jnp.int32, (n_tok, n_tok), 0)
        c = jax.lax.broadcasted_iota(jnp.int32, (n_tok, n_tok), 1)
        same = jnp.zeros((n_tok, n_tok), dtype=jnp.bool_)
        for bb in range(batch):
            lo, hi = bb * seqlen, (bb + 1) * seqlen
            same = same | (((r >= lo) & (r < hi)) & ((c >= lo) & (c < hi)))
        mask = jnp.where(same, jnp.float32(0.0), jnp.float32(neg_big))

        # ---- transformer layers (statically unrolled; weights stacked on axis 0) ----
        for li in range(num_layers):
            # fused QKV projection (q-scaling folded):  (N,C2) @ (C2,3C2)
            qkv = jnp.dot(x2.astype(bf16), wqkv_ref[li],
                          preferred_element_type=jnp.float32) + bqkv_ref[li]
            qkv_b = qkv.astype(bf16)

            # per-head 2-D attention in the existing (rows, lanes) layout
            head_outs = []
            for h in range(NUM_HEADS):
                q_h = qkv_b[:, h * HEAD_DIM:(h + 1) * HEAD_DIM]                 # (N, D)
                k_h = qkv_b[:, C2 + h * HEAD_DIM:C2 + (h + 1) * HEAD_DIM]       # (N, D)
                v_h = qkv_b[:, 2 * C2 + h * HEAD_DIM:2 * C2 + (h + 1) * HEAD_DIM]
                # scores: Q_h @ K_h^T  (NT contraction), f32 acc, plus cross-batch mask
                s = jax.lax.dot_general(
                    q_h, k_h, (((1,), (1,)), ((), ())),
                    preferred_element_type=jnp.float32) + mask                  # (N, N)
                s = s - jnp.max(s, axis=-1, keepdims=True)
                e = jnp.exp(s)
                pr = e * pl.reciprocal(jnp.sum(e, axis=-1, keepdims=True),
                                       approx=True)
                head_outs.append(jnp.dot(pr.astype(bf16), v_h,
                                         preferred_element_type=jnp.float32))   # (N, D)
            attn = jnp.concatenate(head_outs, axis=-1)                          # (N, C2)

            # out projection + residual
            x2 = jnp.dot(attn.astype(bf16), wo_ref[li],
                         preferred_element_type=jnp.float32) + bo_ref[li] + x2
            # folded FFN (fc2(fc1(x)) == x @ (w2@w1)^T, no nonlinearity) + residual
            x2 = jnp.dot(x2.astype(bf16), wffn_ref[li],
                         preferred_element_type=jnp.float32) + x2

        # ---- fused output relayout: (N, C2) -> (batch, C2, seqlen) ----
        xt = x2.T                                     # (C2, N), columns (b, l)-ordered
        for bb in range(batch):
            o_ref[bb] = xt[:, bb * seqlen:(bb + 1) * seqlen].astype(o_ref.dtype)

    return kernel


# ----------------------------- weight preparation ------------------------------
def prepare_params(params):
    """One-time folds (f32, HIGHEST precision), transposes, stacking, bf16 cast."""
    hp = jax.lax.Precision.HIGHEST
    bf16 = jnp.bfloat16
    prep = {}
    if params["conv_w"] is not None:
        inv_std = 1.0 / jnp.sqrt(params["bn_var"] + BN_EPS)
        scale = params["bn_gamma"] * inv_std
        shift = params["bn_beta"] - params["bn_mean"] * scale
        prep["wc"] = (params["conv_w"] * scale[:, None]).astype(bf16)   # (C2, C1)
        prep["bc"] = shift.reshape(C2, 1)                               # f32 column
    else:
        prep["wc"] = None
        prep["bc"] = None
    prep["wl"] = params["lin_w"].T.astype(bf16)
    prep["bl"] = params["lin_b"].reshape(1, C2)

    scaling = 1.0 / math.sqrt(HEAD_DIM)
    wqkv, bqkv, wo, bo, wffn = [], [], [], [], []
    for lp in params["layers"]:
        wq_f = jnp.dot(lp["wiq"], lp["wq"], precision=hp).T * scaling
        wk_f = jnp.dot(lp["wik"], lp["wk"], precision=hp).T
        wv_f = jnp.dot(lp["wiv"], lp["wv"], precision=hp).T
        wqkv.append(jnp.concatenate([wq_f, wk_f, wv_f], axis=1))        # (C2, 3C2)
        bqkv.append(jnp.concatenate(
            [lp["biq"] * scaling, lp["bik"], lp["biv"]]).reshape(1, 3 * C2))
        wo.append(lp["wo"].T)
        bo.append(lp["bo"].reshape(1, C2))
        wffn.append(jnp.dot(lp["w2"], lp["w1"], precision=hp).T)        # (C2, C2)
    prep["wqkv"] = jnp.stack(wqkv).astype(bf16)   # (NUM_LAYERS, C2, 3C2)
    prep["bqkv"] = jnp.stack(bqkv)                # (NUM_LAYERS, 1, 3C2) f32
    prep["wo"] = jnp.stack(wo).astype(bf16)       # (NUM_LAYERS, C2, C2)
    prep["bo"] = jnp.stack(bo)                    # (NUM_LAYERS, 1, C2) f32
    prep["wffn"] = jnp.stack(wffn).astype(bf16)   # (NUM_LAYERS, C2, C2)
    return prep


# ----------------------------- wrapper ------------------------------------------
def transformer_block(x, prep):
    b, c_in, w, h = x.shape
    l = w * h
    has_conv = prep["wc"] is not None

    # Pure reshape of NCHW (no data movement); relayout is done inside the kernel.
    xin = x.reshape(b, c_in, l)

    args = [xin]
    if has_conv:
        args += [prep["wc"], prep["bc"]]
    args += [prep["wl"], prep["bl"],
             prep["wqkv"], prep["bqkv"], prep["wo"], prep["bo"], prep["wffn"]]

    vmem_specs = [pl.BlockSpec(memory_space=pltpu.MemorySpace.VMEM) for _ in args]
    o3 = pl.pallas_call(
        make_fused_kernel(has_conv, NUM_LAYERS, b, l),
        out_shape=jax.ShapeDtypeStruct((b, C2, l), jnp.float32),
        in_specs=vmem_specs,
        out_specs=pl.BlockSpec(memory_space=pltpu.MemorySpace.VMEM),
    )(*args)

    # (b, C2, l) -> (b, C2, w, h): contiguous reshape, no data movement.
    return o3.reshape(b, C2, w, h)


# ----------------------------- pure-JAX reference ------------------------------
def _ref_layer(x, lp):
    # x: (L, B, C) sequence-first, as in PyTorch
    ll, bb, e = x.shape
    q = x @ lp["wq"].T
    k = x @ lp["wk"].T
    v = x @ lp["wv"].T
    qp = q @ lp["wiq"].T + lp["biq"]
    kp = k @ lp["wik"].T + lp["bik"]
    vp = v @ lp["wiv"].T + lp["biv"]

    def split(t):
        return t.reshape(ll, bb * NUM_HEADS, HEAD_DIM).transpose(1, 0, 2)

    qh = split(qp) * (HEAD_DIM ** -0.5)
    kh = split(kp)
    vh = split(vp)
    s = qh @ jnp.swapaxes(kh, 1, 2)
    a = jax.nn.softmax(s, axis=-1)
    o = a @ vh
    o = o.transpose(1, 0, 2).reshape(ll, bb, e)
    o = o @ lp["wo"].T + lp["bo"]
    x = o + x
    return (x @ lp["w1"].T) @ lp["w2"].T + x


def ref_forward(x, params):
    b, c_in, w, h = x.shape
    if params["conv_w"] is not None:
        z = jnp.einsum("oc,bchw->bohw", params["conv_w"], x)
        inv_std = 1.0 / jnp.sqrt(params["bn_var"] + BN_EPS)
        scale = params["bn_gamma"] * inv_std
        shift = params["bn_beta"] - params["bn_mean"] * scale
        z = z * scale[None, :, None, None] + shift[None, :, None, None]
        x = z * jax.nn.sigmoid(z)
    l = w * h
    p = x.reshape(b, C2, l).transpose(2, 0, 1)        # (L, b, C2)
    x = p + (p @ params["lin_w"].T + params["lin_b"])
    for lp in params["layers"]:
        x = _ref_layer(x, lp)
    return x.transpose(1, 2, 0).reshape(b, C2, w, h)


# ----------------------------- deterministic params ---------------------------
def init_params(key):
    ks = iter(jax.random.split(key, 64))

    def nrm(shape, s=0.1):
        return (s * jax.random.normal(next(ks), shape)).astype(jnp.float32)

    params = {}
    if C1 != C2:
        params["conv_w"] = nrm((C2, C1), 0.3)                     # 1x1 conv weight
        params["bn_gamma"] = 1.0 + nrm((C2,), 0.05)
        params["bn_beta"] = nrm((C2,), 0.05)
        params["bn_mean"] = nrm((C2,), 0.05)
        params["bn_var"] = 1.0 + jnp.abs(nrm((C2,), 0.05))
    else:
        params["conv_w"] = None
    params["lin_w"] = nrm((C2, C2))
    params["lin_b"] = nrm((C2,))
    layers = []
    for _ in range(NUM_LAYERS):
        lp = {}
        for name in ["wq", "wk", "wv", "wiq", "wik", "wiv", "wo", "w1", "w2"]:
            lp[name] = nrm((C2, C2))
        for name in ["biq", "bik", "biv", "bo"]:
            lp[name] = nrm((C2,))
        layers.append(lp)
    params["layers"] = layers
    return params


# ----------------------------- main --------------------------------------------
if __name__ == "__main__":
    key = jax.random.PRNGKey(0)
    pkey, xkey = jax.random.split(key)
    params = init_params(pkey)
    x = jax.random.normal(xkey, (B, C1, W, H), dtype=jnp.float32)

    prep = prepare_params(params)              # one-time fold/transpose/stack/bf16
    fwd = jax.jit(transformer_block)

    out = jax.block_until_ready(fwd(x, prep))

    with jax.default_matmul_precision("highest"):
        ref = ref_forward(x, params)
    err = float(jnp.max(jnp.abs(out - ref)))
    assert out.shape == (B, C2, W, H), out.shape
    # bf16 MXU operands (f32 accumulation) consume part of the error budget.
    assert err < 2e-2, f"max abs err {err}"
    print("KERNEL_OK")
</pallas_src>

<mosaic_0001>
module attributes {stable_mosaic.version = 11 : i64} {
  func.func @kernel(%arg0: memref<2x4x16xf32, #tpu.memory_space<vmem>>, %arg1: memref<32x4xbf16, #tpu.memory_space<vmem>>, %arg2: memref<32x1xf32, #tpu.memory_space<vmem>>, %arg3: memref<32x32xbf16, #tpu.memory_space<vmem>>, %arg4: memref<1x32xf32, #tpu.memory_space<vmem>>, %arg5: memref<2x32x96xbf16, #tpu.memory_space<vmem>>, %arg6: memref<2x1x96xf32, #tpu.memory_space<vmem>>, %arg7: memref<2x32x32xbf16, #tpu.memory_space<vmem>>, %arg8: memref<2x1x32xf32, #tpu.memory_space<vmem>>, %arg9: memref<2x32x32xbf16, #tpu.memory_space<vmem>>, %arg10: memref<2x32x16xf32, #tpu.memory_space<vmem>>) attributes {dimension_semantics = [], scalar_prefetch = 0 : i64, scratch_operands = 0 : i64, tpu.core_type = #tpu.core_type<tc>} {
    %c0 = arith.constant 0 : index
    %c0_0 = arith.constant 0 : index
    %c0_1 = arith.constant 0 : index
    %0 = vector.load %arg0[%c0, %c0_0, %c0_1] : memref<2x4x16xf32, #tpu.memory_space<vmem>>, vector<1x4x16xf32>
    %1 = vector.shape_cast %0 : vector<1x4x16xf32> to vector<4x16xf32>
    %c1 = arith.constant 1 : index
    %c0_2 = arith.constant 0 : index
    %c0_3 = arith.constant 0 : index
    %2 = vector.load %arg0[%c1, %c0_2, %c0_3] : memref<2x4x16xf32, #tpu.memory_space<vmem>>, vector<1x4x16xf32>
    %3 = vector.shape_cast %2 : vector<1x4x16xf32> to vector<4x16xf32>
    %4 = tpu.concatenate %1, %3 in 1 : vector<4x16xf32>, vector<4x16xf32> -> vector<4x32xf32>
    %c0_4 = arith.constant 0 : index
    %c0_5 = arith.constant 0 : index
    %5 = vector.load %arg1[%c0_4, %c0_5] : memref<32x4xbf16, #tpu.memory_space<vmem>>, vector<32x4xbf16>
    %6 = arith.truncf %4 : vector<4x32xf32> to vector<4x32xbf16>
    %cst = arith.constant dense<0.000000e+00> : vector<32x32xf32>
    %7 = tpu.matmul %5, %6, %cst {dimension_numbers = #tpu.dot_dimension_numbers<[1], [0], [0], [1], [0, 0, 1, 1], [], []>} : vector<32x4xbf16>, vector<4x32xbf16>, vector<32x32xf32> -> vector<32x32xf32>
    %c0_6 = arith.constant 0 : index
    %c0_7 = arith.constant 0 : index
    %8 = vector.load %arg2[%c0_6, %c0_7] : memref<32x1xf32, #tpu.memory_space<vmem>>, vector<32x1xf32>
    %9 = vector.broadcast %8 : vector<32x1xf32> to vector<32x32xf32>
    %10 = arith.addf %7, %9 : vector<32x32xf32>
    %cst_8 = arith.constant 5.000000e-01 : f32
    %11 = vector.broadcast %cst_8 : f32 to vector<32x32xf32>
    %12 = arith.mulf %11, %10 : vector<32x32xf32>
    %13 = math.tanh %12 : vector<32x32xf32>
    %cst_9 = arith.constant 1.000000e+00 : f32
    %14 = vector.broadcast %cst_9 : f32 to vector<32x32xf32>
    %15 = arith.addf %13, %14 : vector<32x32xf32>
    %cst_10 = arith.constant 5.000000e-01 : f32
    %16 = vector.broadcast %cst_10 : f32 to vector<32x32xf32>
    %17 = arith.mulf %16, %15 : vector<32x32xf32>
    %18 = arith.mulf %10, %17 : vector<32x32xf32>
    %19 = tpu.transpose %18, [1, 0] : vector<32x32xf32> -> vector<32x32xf32>
    %20 = arith.truncf %19 : vector<32x32xf32> to vector<32x32xbf16>
    %c0_11 = arith.constant 0 : index
    %c0_12 = arith.constant 0 : index
    %21 = vector.load %arg3[%c0_11, %c0_12] : memref<32x32xbf16, #tpu.memory_space<vmem>>, vector<32x32xbf16>
    %cst_13 = arith.constant dense<0.000000e+00> : vector<32x32xf32>
    %22 = tpu.matmul %20, %21, %cst_13 {dimension_numbers = #tpu.dot_dimension_numbers<[1], [0], [0], [1], [0, 0, 1, 1], [], []>} : vector<32x32xbf16>, vector<32x32xbf16>, vector<32x32xf32> -> vector<32x32xf32>
    %23 = arith.addf %19, %22 : vector<32x32xf32>
    %c0_14 = arith.constant 0 : index
    %c0_15 = arith.constant 0 : index
    %24 = vector.load %arg4[%c0_14, %c0_15] : memref<1x32xf32, #tpu.memory_space<vmem>>, vector<1x32xf32>
    %25 = vector.broadcast %24 : vector<1x32xf32> to vector<32x32xf32>
    %26 = arith.addf %23, %25 : vector<32x32xf32>
    %27 = tpu.iota {dimensions = array<i32: 0>} : vector<32x32xi32>
    %28 = tpu.iota {dimensions = array<i32: 1>} : vector<32x32xi32>
    %false = arith.constant false
    %29 = vector.broadcast %false : i1 to vector<32x32xi1>
    %c0_i32 = arith.constant 0 : i32
    %30 = vector.broadcast %c0_i32 : i32 to vector<32x32xi32>
    %31 = arith.cmpi sge, %27, %30 : vector<32x32xi32>
    %c16_i32 = arith.constant 16 : i32
    %32 = vector.broadcast %c16_i32 : i32 to vector<32x32xi32>
    %33 = arith.cmpi slt, %27, %32 : vector<32x32xi32>
    %34 = arith.andi %31, %33 : vector<32x32xi1>
    %c0_i32_16 = arith.constant 0 : i32
    %35 = vector.broadcast %c0_i32_16 : i32 to vector<32x32xi32>
    %36 = arith.cmpi sge, %28, %35 : vector<32x32xi32>
    %c16_i32_17 = arith.constant 16 : i32
    %37 = vector.broadcast %c16_i32_17 : i32 to vector<32x32xi32>
    %38 = arith.cmpi slt, %28, %37 : vector<32x32xi32>
    %39 = arith.andi %36, %38 : vector<32x32xi1>
    %40 = arith.andi %34, %39 : vector<32x32xi1>
    %41 = arith.ori %29, %40 : vector<32x32xi1>
    %c16_i32_18 = arith.constant 16 : i32
    %42 = vector.broadcast %c16_i32_18 : i32 to vector<32x32xi32>
    %43 = arith.cmpi sge, %27, %42 : vector<32x32xi32>
    %c32_i32 = arith.constant 32 : i32
    %44 = vector.broadcast %c32_i32 : i32 to vector<32x32xi32>
    %45 = arith.cmpi slt, %27, %44 : vector<32x32xi32>
    %46 = arith.andi %43, %45 : vector<32x32xi1>
    %c16_i32_19 = arith.constant 16 : i32
    %47 = vector.broadcast %c16_i32_19 : i32 to vector<32x32xi32>
    %48 = arith.cmpi sge, %28, %47 : vector<32x32xi32>
    %c32_i32_20 = arith.constant 32 : i32
    %49 = vector.broadcast %c32_i32_20 : i32 to vector<32x32xi32>
    %50 = arith.cmpi slt, %28, %49 : vector<32x32xi32>
    %51 = arith.andi %48, %50 : vector<32x32xi1>
    %52 = arith.andi %46, %51 : vector<32x32xi1>
    %53 = arith.ori %41, %52 : vector<32x32xi1>
    %cst_21 = arith.constant 0.000000e+00 : f32
    %cst_22 = arith.constant -1.000000e+30 : f32
    %54 = vector.broadcast %cst_21 : f32 to vector<32x32xf32>
    %55 = vector.broadcast %cst_22 : f32 to vector<32x32xf32>
    %56 = arith.select %53, %54, %55 : vector<32x32xi1>, vector<32x32xf32>
    %57 = arith.truncf %26 : vector<32x32xf32> to vector<32x32xbf16>
    %c0_23 = arith.constant 0 : index
    %c0_24 = arith.constant 0 : index
    %c0_25 = arith.constant 0 : index
    %58 = vector.load %arg5[%c0_23, %c0_24, %c0_25] : memref<2x32x96xbf16, #tpu.memory_space<vmem>>, vector<1x32x96xbf16>
    %59 = vector.shape_cast %58 : vector<1x32x96xbf16> to vector<32x96xbf16>
    %cst_26 = arith.constant dense<0.000000e+00> : vector<32x96xf32>
    %60 = tpu.matmul %57, %59, %cst_26 {dimension_numbers = #tpu.dot_dimension_numbers<[1], [0], [0], [1], [0, 0, 1, 1], [], []>} : vector<32x32xbf16>, vector<32x96xbf16>, vector<32x96xf32> -> vector<32x96xf32>
    %c0_27 = arith.constant 0 : index
    %c0_28 = arith.constant 0 : index
    %c0_29 = arith.constant 0 : index
    %61 = vector.load %arg6[%c0_27, %c0_28, %c0_29] : memref<2x1x96xf32, #tpu.memory_space<vmem>>, vector<1x1x96xf32>
    %62 = vector.shape_cast %61 : vector<1x1x96xf32> to vector<1x96xf32>
    %63 = vector.broadcast %62 : vector<1x96xf32> to vector<32x96xf32>
    %64 = arith.addf %60, %63 : vector<32x96xf32>
    %65 = arith.truncf %64 : vector<32x96xf32> to vector<32x96xbf16>
    %66 = vector.extract_strided_slice %65 {offsets = [0, 0], sizes = [32, 8], strides = [1, 1]} : vector<32x96xbf16> to vector<32x8xbf16>
    %67 = vector.extract_strided_slice %65 {offsets = [0, 32], sizes = [32, 8], strides = [1, 1]} : vector<32x96xbf16> to vector<32x8xbf16>
    %68 = vector.extract_strided_slice %65 {offsets = [0, 64], sizes = [32, 8], strides = [1, 1]} : vector<32x96xbf16> to vector<32x8xbf16>
    %cst_30 = arith.constant dense<0.000000e+00> : vector<32x32xf32>
    %69 = tpu.matmul %66, %67, %cst_30 {dimension_numbers = #tpu.dot_dimension_numbers<[1], [1], [0], [0], [0, 0, 1, 0], [], []>} : vector<32x8xbf16>, vector<32x8xbf16>, vector<32x32xf32> -> vector<32x32xf32>
    %70 = arith.addf %69, %56 : vector<32x32xf32>
    %cst_31 = arith.constant dense<0xFF800000> : vector<32xf32>
    %71 = vector.multi_reduction <maximumf>, %70, %cst_31 [1] : vector<32x32xf32> to vector<32xf32>
    %72 = vector.shape_cast %71 : vector<32xf32> to vector<32x1xf32>
    %73 = vector.broadcast %72 : vector<32x1xf32> to vector<32x32xf32>
    %74 = arith.subf %70, %73 : vector<32x32xf32>
    %75 = math.exp %74 : vector<32x32xf32>
    %cst_32 = arith.constant dense<0.000000e+00> : vector<32xf32>
    %76 = vector.multi_reduction <add>, %75, %cst_32 [1] : vector<32x32xf32> to vector<32xf32>
    %77 = vector.shape_cast %76 : vector<32xf32> to vector<32x1xf32>
    %78 = tpu.reciprocal %77 {approx = true} : vector<32x1xf32> -> vector<32x1xf32>
    %79 = vector.broadcast %78 : vector<32x1xf32> to vector<32x32xf32>
    %80 = arith.mulf %75, %79 : vector<32x32xf32>
    %81 = arith.truncf %80 : vector<32x32xf32> to vector<32x32xbf16>
    %cst_33 = arith.constant dense<0.000000e+00> : vector<32x8xf32>
    %82 = tpu.matmul %81, %68, %cst_33 {dimension_numbers = #tpu.dot_dimension_numbers<[1], [0], [0], [1], [0, 0, 1, 1], [], []>} : vector<32x32xbf16>, vector<32x8xbf16>, vector<32x8xf32> -> vector<32x8xf32>
    %83 = vector.extract_strided_slice %65 {offsets = [0, 8], sizes = [32, 8], strides = [1, 1]} : vector<32x96xbf16> to vector<32x8xbf16>
    %84 = vector.extract_strided_slice %65 {offsets = [0, 40], sizes = [32, 8], strides = [1, 1]} : vector<32x96xbf16> to vector<32x8xbf16>
    %85 = vector.extract_strided_slice %65 {offsets = [0, 72], sizes = [32, 8], strides = [1, 1]} : vector<32x96xbf16> to vector<32x8xbf16>
    %cst_34 = arith.constant dense<0.000000e+00> : vector<32x32xf32>
    %86 = tpu.matmul %83, %84, %cst_34 {dimension_numbers = #tpu.dot_dimension_numbers<[1], [1], [0], [0], [0, 0, 1, 0], [], []>} : vector<32x8xbf16>, vector<32x8xbf16>, vector<32x32xf32> -> vector<32x32xf32>
    %87 = arith.addf %86, %56 : vector<32x32xf32>
    %cst_35 = arith.constant dense<0xFF800000> : vector<32xf32>
    %88 = vector.multi_reduction <maximumf>, %87, %cst_35 [1] : vector<32x32xf32> to vector<32xf32>
    %89 = vector.shape_cast %88 : vector<32xf32> to vector<32x1xf32>
    %90 = vector.broadcast %89 : vector<32x1xf32> to vector<32x32xf32>
    %91 = arith.subf %87, %90 : vector<32x32xf32>
    %92 = math.exp %91 : vector<32x32xf32>
    %cst_36 = arith.constant dense<0.000000e+00> : vector<32xf32>
    %93 = vector.multi_reduction <add>, %92, %cst_36 [1] : vector<32x32xf32> to vector<32xf32>
    %94 = vector.shape_cast %93 : vector<32xf32> to vector<32x1xf32>
    %95 = tpu.reciprocal %94 {approx = true} : vector<32x1xf32> -> vector<32x1xf32>
    %96 = vector.broadcast %95 : vector<32x1xf32> to vector<32x32xf32>
    %97 = arith.mulf %92, %96 : vector<32x32xf32>
    %98 = arith.truncf %97 : vector<32x32xf32> to vector<32x32xbf16>
    %cst_37 = arith.constant dense<0.000000e+00> : vector<32x8xf32>
    %99 = tpu.matmul %98, %85, %cst_37 {dimension_numbers = #tpu.dot_dimension_numbers<[1], [0], [0], [1], [0, 0, 1, 1], [], []>} : vector<32x32xbf16>, vector<32x8xbf16>, vector<32x8xf32> -> vector<32x8xf32>
    %100 = vector.extract_strided_slice %65 {offsets = [0, 16], sizes = [32, 8], strides = [1, 1]} : vector<32x96xbf16> to vector<32x8xbf16>
    %101 = vector.extract_strided_slice %65 {offsets = [0, 48], sizes = [32, 8], strides = [1, 1]} : vector<32x96xbf16> to vector<32x8xbf16>
    %102 = vector.extract_strided_slice %65 {offsets = [0, 80], sizes = [32, 8], strides = [1, 1]} : vector<32x96xbf16> to vector<32x8xbf16>
    %cst_38 = arith.constant dense<0.000000e+00> : vector<32x32xf32>
    %103 = tpu.matmul %100, %101, %cst_38 {dimension_numbers = #tpu.dot_dimension_numbers<[1], [1], [0], [0], [0, 0, 1, 0], [], []>} : vector<32x8xbf16>, vector<32x8xbf16>, vector<32x32xf32> -> vector<32x32xf32>
    %104 = arith.addf %103, %56 : vector<32x32xf32>
    %cst_39 = arith.constant dense<0xFF800000> : vector<32xf32>
    %105 = vector.multi_reduction <maximumf>, %104, %cst_39 [1] : vector<32x32xf32> to vector<32xf32>
    %106 = vector.shape_cast %105 : vector<32xf32> to vector<32x1xf32>
    %107 = vector.broadcast %106 : vector<32x1xf32> to vector<32x32xf32>
    %108 = arith.subf %104, %107 : vector<32x32xf32>
    %109 = math.exp %108 : vector<32x32xf32>
    %cst_40 = arith.constant dense<0.000000e+00> : vector<32xf32>
    %110 = vector.multi_reduction <add>, %109, %cst_40 [1] : vector<32x32xf32> to vector<32xf32>
    %111 = vector.shape_cast %110 : vector<32xf32> to vector<32x1xf32>
    %112 = tpu.reciprocal %111 {approx = true} : vector<32x1xf32> -> vector<32x1xf32>
    %113 = vector.broadcast %112 : vector<32x1xf32> to vector<32x32xf32>
    %114 = arith.mulf %109, %113 : vector<32x32xf32>
    %115 = arith.truncf %114 : vector<32x32xf32> to vector<32x32xbf16>
    %cst_41 = arith.constant dense<0.000000e+00> : vector<32x8xf32>
    %116 = tpu.matmul %115, %102, %cst_41 {dimension_numbers = #tpu.dot_dimension_numbers<[1], [0], [0], [1], [0, 0, 1, 1], [], []>} : vector<32x32xbf16>, vector<32x8xbf16>, vector<32x8xf32> -> vector<32x8xf32>
    %117 = vector.extract_strided_slice %65 {offsets = [0, 24], sizes = [32, 8], strides = [1, 1]} : vector<32x96xbf16> to vector<32x8xbf16>
    %118 = vector.extract_strided_slice %65 {offsets = [0, 56], sizes = [32, 8], strides = [1, 1]} : vector<32x96xbf16> to vector<32x8xbf16>
    %119 = vector.extract_strided_slice %65 {offsets = [0, 88], sizes = [32, 8], strides = [1, 1]} : vector<32x96xbf16> to vector<32x8xbf16>
    %cst_42 = arith.constant dense<0.000000e+00> : vector<32x32xf32>
    %120 = tpu.matmul %117, %118, %cst_42 {dimension_numbers = #tpu.dot_dimension_numbers<[1], [1], [0], [0], [0, 0, 1, 0], [], []>} : vector<32x8xbf16>, vector<32x8xbf16>, vector<32x32xf32> -> vector<32x32xf32>
    %121 = arith.addf %120, %56 : vector<32x32xf32>
    %cst_43 = arith.constant dense<0xFF800000> : vector<32xf32>
    %122 = vector.multi_reduction <maximumf>, %121, %cst_43 [1] : vector<32x32xf32> to vector<32xf32>
    %123 = vector.shape_cast %122 : vector<32xf32> to vector<32x1xf32>
    %124 = vector.broadcast %123 : vector<32x1xf32> to vector<32x32xf32>
    %125 = arith.subf %121, %124 : vector<32x32xf32>
    %126 = math.exp %125 : vector<32x32xf32>
    %cst_44 = arith.constant dense<0.000000e+00> : vector<32xf32>
    %127 = vector.multi_reduction <add>, %126, %cst_44 [1] : vector<32x32xf32> to vector<32xf32>
    %128 = vector.shape_cast %127 : vector<32xf32> to vector<32x1xf32>
    %129 = tpu.reciprocal %128 {approx = true} : vector<32x1xf32> -> vector<32x1xf32>
    %130 = vector.broadcast %129 : vector<32x1xf32> to vector<32x32xf32>
    %131 = arith.mulf %126, %130 : vector<32x32xf32>
    %132 = arith.truncf %131 : vector<32x32xf32> to vector<32x32xbf16>
    %cst_45 = arith.constant dense<0.000000e+00> : vector<32x8xf32>
    %133 = tpu.matmul %132, %119, %cst_45 {dimension_numbers = #tpu.dot_dimension_numbers<[1], [0], [0], [1], [0, 0, 1, 1], [], []>} : vector<32x32xbf16>, vector<32x8xbf16>, vector<32x8xf32> -> vector<32x8xf32>
    %134 = tpu.concatenate %82, %99, %116, %133 in 1 : vector<32x8xf32>, vector<32x8xf32>, vector<32x8xf32>, vector<32x8xf32> -> vector<32x32xf32>
    %135 = arith.truncf %134 : vector<32x32xf32> to vector<32x32xbf16>
    %c0_46 = arith.constant 0 : index
    %c0_47 = arith.constant 0 : index
    %c0_48 = arith.constant 0 : index
    %136 = vector.load %arg7[%c0_46, %c0_47, %c0_48] : memref<2x32x32xbf16, #tpu.memory_space<vmem>>, vector<1x32x32xbf16>
    %137 = vector.shape_cast %136 : vector<1x32x32xbf16> to vector<32x32xbf16>
    %cst_49 = arith.constant dense<0.000000e+00> : vector<32x32xf32>
    %138 = tpu.matmul %135, %137, %cst_49 {dimension_numbers = #tpu.dot_dimension_numbers<[1], [0], [0], [1], [0, 0, 1, 1], [], []>} : vector<32x32xbf16>, vector<32x32xbf16>, vector<32x32xf32> -> vector<32x32xf32>
    %c0_50 = arith.constant 0 : index
    %c0_51 = arith.constant 0 : index
    %c0_52 = arith.constant 0 : index
    %139 = vector.load %arg8[%c0_50, %c0_51, %c0_52] : memref<2x1x32xf32, #tpu.memory_space<vmem>>, vector<1x1x32xf32>
    %140 = vector.shape_cast %139 : vector<1x1x32xf32> to vector<1x32xf32>
    %141 = vector.broadcast %140 : vector<1x32xf32> to vector<32x32xf32>
    %142 = arith.addf %138, %141 : vector<32x32xf32>
    %143 = arith.addf %142, %26 : vector<32x32xf32>
    %144 = arith.truncf %143 : vector<32x32xf32> to vector<32x32xbf16>
    %c0_53 = arith.constant 0 : index
    %c0_54 = arith.constant 0 : index
    %c0_55 = arith.constant 0 : index
    %145 = vector.load %arg9[%c0_53, %c0_54, %c0_55] : memref<2x32x32xbf16, #tpu.memory_space<vmem>>, vector<1x32x32xbf16>
    %146 = vector.shape_cast %145 : vector<1x32x32xbf16> to vector<32x32xbf16>
    %cst_56 = arith.constant dense<0.000000e+00> : vector<32x32xf32>
    %147 = tpu.matmul %144, %146, %cst_56 {dimension_numbers = #tpu.dot_dimension_numbers<[1], [0], [0], [1], [0, 0, 1, 1], [], []>} : vector<32x32xbf16>, vector<32x32xbf16>, vector<32x32xf32> -> vector<32x32xf32>
    %148 = arith.addf %147, %143 : vector<32x32xf32>
    %149 = arith.truncf %148 : vector<32x32xf32> to vector<32x32xbf16>
    %c1_57 = arith.constant 1 : index
    %c0_58 = arith.constant 0 : index
    %c0_59 = arith.constant 0 : index
    %150 = vector.load %arg5[%c1_57, %c0_58, %c0_59] : memref<2x32x96xbf16, #tpu.memory_space<vmem>>, vector<1x32x96xbf16>
    %151 = vector.shape_cast %150 : vector<1x32x96xbf16> to vector<32x96xbf16>
    %cst_60 = arith.constant dense<0.000000e+00> : vector<32x96xf32>
    %152 = tpu.matmul %149, %151, %cst_60 {dimension_numbers = #tpu.dot_dimension_numbers<[1], [0], [0], [1], [0, 0, 1, 1], [], []>} : vector<32x32xbf16>, vector<32x96xbf16>, vector<32x96xf32> -> vector<32x96xf32>
    %c1_61 = arith.constant 1 : index
    %c0_62 = arith.constant 0 : index
    %c0_63 = arith.constant 0 : index
    %153 = vector.load %arg6[%c1_61, %c0_62, %c0_63] : memref<2x1x96xf32, #tpu.memory_space<vmem>>, vector<1x1x96xf32>
    %154 = vector.shape_cast %153 : vector<1x1x96xf32> to vector<1x96xf32>
    %155 = vector.broadcast %154 : vector<1x96xf32> to vector<32x96xf32>
    %156 = arith.addf %152, %155 : vector<32x96xf32>
    %157 = arith.truncf %156 : vector<32x96xf32> to vector<32x96xbf16>
    %158 = vector.extract_strided_slice %157 {offsets = [0, 0], sizes = [32, 8], strides = [1, 1]} : vector<32x96xbf16> to vector<32x8xbf16>
    %159 = vector.extract_strided_slice %157 {offsets = [0, 32], sizes = [32, 8], strides = [1, 1]} : vector<32x96xbf16> to vector<32x8xbf16>
    %160 = vector.extract_strided_slice %157 {offsets = [0, 64], sizes = [32, 8], strides = [1, 1]} : vector<32x96xbf16> to vector<32x8xbf16>
    %cst_64 = arith.constant dense<0.000000e+00> : vector<32x32xf32>
    %161 = tpu.matmul %158, %159, %cst_64 {dimension_numbers = #tpu.dot_dimension_numbers<[1], [1], [0], [0], [0, 0, 1, 0], [], []>} : vector<32x8xbf16>, vector<32x8xbf16>, vector<32x32xf32> -> vector<32x32xf32>
    %162 = arith.addf %161, %56 : vector<32x32xf32>
    %cst_65 = arith.constant dense<0xFF800000> : vector<32xf32>
    %163 = vector.multi_reduction <maximumf>, %162, %cst_65 [1] : vector<32x32xf32> to vector<32xf32>
    %164 = vector.shape_cast %163 : vector<32xf32> to vector<32x1xf32>
    %165 = vector.broadcast %164 : vector<32x1xf32> to vector<32x32xf32>
    %166 = arith.subf %162, %165 : vector<32x32xf32>
    %167 = math.exp %166 : vector<32x32xf32>
    %cst_66 = arith.constant dense<0.000000e+00> : vector<32xf32>
    %168 = vector.multi_reduction <add>, %167, %cst_66 [1] : vector<32x32xf32> to vector<32xf32>
    %169 = vector.shape_cast %168 : vector<32xf32> to vector<32x1xf32>
    %170 = tpu.reciprocal %169 {approx = true} : vector<32x1xf32> -> vector<32x1xf32>
    %171 = vector.broadcast %170 : vector<32x1xf32> to vector<32x32xf32>
    %172 = arith.mulf %167, %171 : vector<32x32xf32>
    %173 = arith.truncf %172 : vector<32x32xf32> to vector<32x32xbf16>
    %cst_67 = arith.constant dense<0.000000e+00> : vector<32x8xf32>
    %174 = tpu.matmul %173, %160, %cst_67 {dimension_numbers = #tpu.dot_dimension_numbers<[1], [0], [0], [1], [0, 0, 1, 1], [], []>} : vector<32x32xbf16>, vector<32x8xbf16>, vector<32x8xf32> -> vector<32x8xf32>
    %175 = vector.extract_strided_slice %157 {offsets = [0, 8], sizes = [32, 8], strides = [1, 1]} : vector<32x96xbf16> to vector<32x8xbf16>
    %176 = vector.extract_strided_slice %157 {offsets = [0, 40], sizes = [32, 8], strides = [1, 1]} : vector<32x96xbf16> to vector<32x8xbf16>
    %177 = vector.extract_strided_slice %157 {offsets = [0, 72], sizes = [32, 8], strides = [1, 1]} : vector<32x96xbf16> to vector<32x8xbf16>
    %cst_68 = arith.constant dense<0.000000e+00> : vector<32x32xf32>
    %178 = tpu.matmul %175, %176, %cst_68 {dimension_numbers = #tpu.dot_dimension_numbers<[1], [1], [0], [0], [0, 0, 1, 0], [], []>} : vector<32x8xbf16>, vector<32x8xbf16>, vector<32x32xf32> -> vector<32x32xf32>
    %179 = arith.addf %178, %56 : vector<32x32xf32>
    %cst_69 = arith.constant dense<0xFF800000> : vector<32xf32>
    %180 = vector.multi_reduction <maximumf>, %179, %cst_69 [1] : vector<32x32xf32> to vector<32xf32>
    %181 = vector.shape_cast %180 : vector<32xf32> to vector<32x1xf32>
    %182 = vector.broadcast %181 : vector<32x1xf32> to vector<32x32xf32>
    %183 = arith.subf %179, %182 : vector<32x32xf32>
    %184 = math.exp %183 : vector<32x32xf32>
    %cst_70 = arith.constant dense<0.000000e+00> : vector<32xf32>
    %185 = vector.multi_reduction <add>, %184, %cst_70 [1] : vector<32x32xf32> to vector<32xf32>
    %186 = vector.shape_cast %185 : vector<32xf32> to vector<32x1xf32>
    %187 = tpu.reciprocal %186 {approx = true} : vector<32x1xf32> -> vector<32x1xf32>
    %188 = vector.broadcast %187 : vector<32x1xf32> to vector<32x32xf32>
    %189 = arith.mulf %184, %188 : vector<32x32xf32>
    %190 = arith.truncf %189 : vector<32x32xf32> to vector<32x32xbf16>
    %cst_71 = arith.constant dense<0.000000e+00> : vector<32x8xf32>
    %191 = tpu.matmul %190, %177, %cst_71 {dimension_numbers = #tpu.dot_dimension_numbers<[1], [0], [0], [1], [0, 0, 1, 1], [], []>} : vector<32x32xbf16>, vector<32x8xbf16>, vector<32x8xf32> -> vector<32x8xf32>
    %192 = vector.extract_strided_slice %157 {offsets = [0, 16], sizes = [32, 8], strides = [1, 1]} : vector<32x96xbf16> to vector<32x8xbf16>
    %193 = vector.extract_strided_slice %157 {offsets = [0, 48], sizes = [32, 8], strides = [1, 1]} : vector<32x96xbf16> to vector<32x8xbf16>
    %194 = vector.extract_strided_slice %157 {offsets = [0, 80], sizes = [32, 8], strides = [1, 1]} : vector<32x96xbf16> to vector<32x8xbf16>
    %cst_72 = arith.constant dense<0.000000e+00> : vector<32x32xf32>
    %195 = tpu.matmul %192, %193, %cst_72 {dimension_numbers = #tpu.dot_dimension_numbers<[1], [1], [0], [0], [0, 0, 1, 0], [], []>} : vector<32x8xbf16>, vector<32x8xbf16>, vector<32x32xf32> -> vector<32x32xf32>
    %196 = arith.addf %195, %56 : vector<32x32xf32>
    %cst_73 = arith.constant dense<0xFF800000> : vector<32xf32>
    %197 = vector.multi_reduction <maximumf>, %196, %cst_73 [1] : vector<32x32xf32> to vector<32xf32>
    %198 = vector.shape_cast %197 : vector<32xf32> to vector<32x1xf32>
    %199 = vector.broadcast %198 : vector<32x1xf32> to vector<32x32xf32>
    %200 = arith.subf %196, %199 : vector<32x32xf32>
    %201 = math.exp %200 : vector<32x32xf32>
    %cst_74 = arith.constant dense<0.000000e+00> : vector<32xf32>
    %202 = vector.multi_reduction <add>, %201, %cst_74 [1] : vector<32x32xf32> to vector<32xf32>
    %203 = vector.shape_cast %202 : vector<32xf32> to vector<32x1xf32>
    %204 = tpu.reciprocal %203 {approx = true} : vector<32x1xf32> -> vector<32x1xf32>
    %205 = vector.broadcast %204 : vector<32x1xf32> to vector<32x32xf32>
    %206 = arith.mulf %201, %205 : vector<32x32xf32>
    %207 = arith.truncf %206 : vector<32x32xf32> to vector<32x32xbf16>
    %cst_75 = arith.constant dense<0.000000e+00> : vector<32x8xf32>
    %208 = tpu.matmul %207, %194, %cst_75 {dimension_numbers = #tpu.dot_dimension_numbers<[1], [0], [0], [1], [0, 0, 1, 1], [], []>} : vector<32x32xbf16>, vector<32x8xbf16>, vector<32x8xf32> -> vector<32x8xf32>
    %209 = vector.extract_strided_slice %157 {offsets = [0, 24], sizes = [32, 8], strides = [1, 1]} : vector<32x96xbf16> to vector<32x8xbf16>
    %210 = vector.extract_strided_slice %157 {offsets = [0, 56], sizes = [32, 8], strides = [1, 1]} : vector<32x96xbf16> to vector<32x8xbf16>
    %211 = vector.extract_strided_slice %157 {offsets = [0, 88], sizes = [32, 8], strides = [1, 1]} : vector<32x96xbf16> to vector<32x8xbf16>
    %cst_76 = arith.constant dense<0.000000e+00> : vector<32x32xf32>
    %212 = tpu.matmul %209, %210, %cst_76 {dimension_numbers = #tpu.dot_dimension_numbers<[1], [1], [0], [0], [0, 0, 1, 0], [], []>} : vector<32x8xbf16>, vector<32x8xbf16>, vector<32x32xf32> -> vector<32x32xf32>
    %213 = arith.addf %212, %56 : vector<32x32xf32>
    %cst_77 = arith.constant dense<0xFF800000> : vector<32xf32>
    %214 = vector.multi_reduction <maximumf>, %213, %cst_77 [1] : vector<32x32xf32> to vector<32xf32>
    %215 = vector.shape_cast %214 : vector<32xf32> to vector<32x1xf32>
    %216 = vector.broadcast %215 : vector<32x1xf32> to vector<32x32xf32>
    %217 = arith.subf %213, %216 : vector<32x32xf32>
    %218 = math.exp %217 : vector<32x32xf32>
    %cst_78 = arith.constant dense<0.000000e+00> : vector<32xf32>
    %219 = vector.multi_reduction <add>, %218, %cst_78 [1] : vector<32x32xf32> to vector<32xf32>
    %220 = vector.shape_cast %219 : vector<32xf32> to vector<32x1xf32>
    %221 = tpu.reciprocal %220 {approx = true} : vector<32x1xf32> -> vector<32x1xf32>
    %222 = vector.broadcast %221 : vector<32x1xf32> to vector<32x32xf32>
    %223 = arith.mulf %218, %222 : vector<32x32xf32>
    %224 = arith.truncf %223 : vector<32x32xf32> to vector<32x32xbf16>
    %cst_79 = arith.constant dense<0.000000e+00> : vector<32x8xf32>
    %225 = tpu.matmul %224, %211, %cst_79 {dimension_numbers = #tpu.dot_dimension_numbers<[1], [0], [0], [1], [0, 0, 1, 1], [], []>} : vector<32x32xbf16>, vector<32x8xbf16>, vector<32x8xf32> -> vector<32x8xf32>
    %226 = tpu.concatenate %174, %191, %208, %225 in 1 : vector<32x8xf32>, vector<32x8xf32>, vector<32x8xf32>, vector<32x8xf32> -> vector<32x32xf32>
    %227 = arith.truncf %226 : vector<32x32xf32> to vector<32x32xbf16>
    %c1_80 = arith.constant 1 : index
    %c0_81 = arith.constant 0 : index
    %c0_82 = arith.constant 0 : index
    %228 = vector.load %arg7[%c1_80, %c0_81, %c0_82] : memref<2x32x32xbf16, #tpu.memory_space<vmem>>, vector<1x32x32xbf16>
    %229 = vector.shape_cast %228 : vector<1x32x32xbf16> to vector<32x32xbf16>
    %cst_83 = arith.constant dense<0.000000e+00> : vector<32x32xf32>
    %230 = tpu.matmul %227, %229, %cst_83 {dimension_numbers = #tpu.dot_dimension_numbers<[1], [0], [0], [1], [0, 0, 1, 1], [], []>} : vector<32x32xbf16>, vector<32x32xbf16>, vector<32x32xf32> -> vector<32x32xf32>
    %c1_84 = arith.constant 1 : index
    %c0_85 = arith.constant 0 : index
    %c0_86 = arith.constant 0 : index
    %231 = vector.load %arg8[%c1_84, %c0_85, %c0_86] : memref<2x1x32xf32, #tpu.memory_space<vmem>>, vector<1x1x32xf32>
    %232 = vector.shape_cast %231 : vector<1x1x32xf32> to vector<1x32xf32>
    %233 = vector.broadcast %232 : vector<1x32xf32> to vector<32x32xf32>
    %234 = arith.addf %230, %233 : vector<32x32xf32>
    %235 = arith.addf %234, %148 : vector<32x32xf32>
    %236 = arith.truncf %235 : vector<32x32xf32> to vector<32x32xbf16>
    %c1_87 = arith.constant 1 : index
    %c0_88 = arith.constant 0 : index
    %c0_89 = arith.constant 0 : index
    %237 = vector.load %arg9[%c1_87, %c0_88, %c0_89] : memref<2x32x32xbf16, #tpu.memory_space<vmem>>, vector<1x32x32xbf16>
    %238 = vector.shape_cast %237 : vector<1x32x32xbf16> to vector<32x32xbf16>
    %cst_90 = arith.constant dense<0.000000e+00> : vector<32x32xf32>
    %239 = tpu.matmul %236, %238, %cst_90 {dimension_numbers = #tpu.dot_dimension_numbers<[1], [0], [0], [1], [0, 0, 1, 1], [], []>} : vector<32x32xbf16>, vector<32x32xbf16>, vector<32x32xf32> -> vector<32x32xf32>
    %240 = arith.addf %239, %235 : vector<32x32xf32>
    %241 = tpu.transpose %240, [1, 0] : vector<32x32xf32> -> vector<32x32xf32>
    %242 = vector.extract_strided_slice %241 {offsets = [0, 0], sizes = [32, 16], strides = [1, 1]} : vector<32x32xf32> to vector<32x16xf32>
    %c0_91 = arith.constant 0 : index
    %c0_92 = arith.constant 0 : index
    %c0_93 = arith.constant 0 : index
    %243 = vector.load %arg10[%c0_91, %c0_92, %c0_93] : memref<2x32x16xf32, #tpu.memory_space<vmem>>, vector<1x32x16xf32>
    %244 = vector.shape_cast %243 : vector<1x32x16xf32> to vector<32x16xf32>
    %245 = vector.shape_cast %242 : vector<32x16xf32> to vector<1x32x16xf32>
    tpu.vector_store %arg10[%c0_91, %c0_92, %c0_93], %245 {strides = array<i32>} : memref<2x32x16xf32, #tpu.memory_space<vmem>>, vector<1x32x16xf32>,
    %246 = vector.extract_strided_slice %241 {offsets = [0, 16], sizes = [32, 16], strides = [1, 1]} : vector<32x32xf32> to vector<32x16xf32>
    %c1_94 = arith.constant 1 : index
    %c0_95 = arith.constant 0 : index
    %c0_96 = arith.constant 0 : index
    %247 = vector.load %arg10[%c1_94, %c0_95, %c0_96] : memref<2x32x16xf32, #tpu.memory_space<vmem>>, vector<1x32x16xf32>
    %248 = vector.shape_cast %247 : vector<1x32x16xf32> to vector<32x16xf32>
    %249 = vector.shape_cast %246 : vector<32x16xf32> to vector<1x32x16xf32>
    tpu.vector_store %arg10[%c1_94, %c0_95, %c0_96], %249 {strides = array<i32>} : memref<2x32x16xf32, #tpu.memory_space<vmem>>, vector<1x32x16xf32>,
    return
  }
}

</mosaic_0001>

<llo_original>
// kernel: transformer_block.1
$region0: #{transformer_block.1}
  #allocation0 [shape = 'u32[]', space=smem, size = 0x4, offset = 0x4, fixed_abs, tag = 'smem constant byte address 0x4 - core index']
  #allocation1 [shape = 'u32[144,128]{1,0:T(1,128)}', space=vmem, size = 0x12000, scoped, tag = 'internal scratch']
  %s0 = inlined_call_operand.vmem [shape: f32[2,4,16], index: 0, kind: input, shape index: {}]
  %s1 = inlined_call_operand.vmem [shape: bf16[32,4], index: 1, kind: input, shape index: {}]
  %s2 = inlined_call_operand.vmem [shape: f32[32,1], index: 2, kind: input, shape index: {}]
  %s3 = inlined_call_operand.vmem [shape: bf16[32,32], index: 3, kind: input, shape index: {}]
  %s4 = inlined_call_operand.vmem [shape: f32[1,32], index: 4, kind: input, shape index: {}]
  %s5 = inlined_call_operand.vmem [shape: bf16[2,32,96], index: 5, kind: input, shape index: {}]
  %s6 = inlined_call_operand.hbm [shape: f32[2,1,96], index: 6, kind: input, shape index: {}]
  %s7 = inlined_call_operand.vmem [shape: bf16[2,32,32], index: 7, kind: input, shape index: {}]
  %s8 = inlined_call_operand.hbm [shape: f32[2,1,32], index: 8, kind: input, shape index: {}]
  %s9 = inlined_call_operand.vmem [shape: bf16[2,32,32], index: 9, kind: input, shape index: {}]
  %s10 = inlined_call_operand.vmem [shape: f32[2,32,16], index: 10, kind: output, shape index: {}]
  %s11 = sld [smem:[#allocation0]]
  $region58: #{transformer_block.1} parent=0
    _
  %s13 = ssub.s32 1, %s11
  %s14 = scalar_select 0, %s13, %s11
  $region1: #{transformer_block.1} parent=0
    #allocation2 [shape = 'u8[1024]{0}', space=vmem, size = 0x400, scoped, tag = 'input window, operand 6, single buffered']
    #allocation3 [shape = 's32[1]{0}', space=sflag, size = 0x4, scoped, tag = 'scoped memory for transformer_block.1']
    #allocation4 [shape = 'u8[1024]{0}', space=vmem, size = 0x400, scoped, tag = 'input window, operand 8, single buffered']
    #allocation5 [shape = 's32[1]{0}', space=sflag, size = 0x4, scoped, tag = 'scoped memory for transformer_block.1']
    %15 = vsyncpa [#allocation3], 0
    %16 = vsyncpa [#allocation5], 0
    // Predicated region
    $region2: #{transformer_block.1} parent=1 // pred_check
      _
    $region3: #{transformer_block.1} parent=1 // pred_check_branch
      %18 = sbr.rel (0) target = $region5
    $region4: #{transformer_block.1} parent=1 // pred_region
      _
    $region5: #{transformer_block.1} parent=1 // pred_fallthru
      _
    // Predicated region
    $region6: #{transformer_block.1} parent=1 // pred_check
      _
    $region7: #{transformer_block.1} parent=1 // pred_check_branch
      %20 = sbr.rel (0) target = $region9
    $region8: #{transformer_block.1} parent=1 // pred_region
      _
    $region9: #{transformer_block.1} parent=1 // pred_fallthru
      _
    // Predicated region
    $region10: #{transformer_block.1} parent=1 // pred_check
      _
    $region11: #{transformer_block.1} parent=1 // pred_check_branch
      %22 = sbr.rel (0) target = $region13
    $region12: #{transformer_block.1} parent=1 // pred_region
      _
    $region13: #{transformer_block.1} parent=1 // pred_fallthru
      _
    // Predicated region
    $region14: #{transformer_block.1} parent=1 // pred_check
      _
    $region15: #{transformer_block.1} parent=1 // pred_check_branch
      %24 = sbr.rel (0) target = $region17
    $region16: #{transformer_block.1} parent=1 // pred_region
      _
    $region17: #{transformer_block.1} parent=1 // pred_fallthru
      _
    // Predicated region
    $region18: #{transformer_block.1} parent=1 // pred_check
      _
    $region19: #{transformer_block.1} parent=1 // pred_check_branch
      %26 = sbr.rel (0) target = $region21
    $region20: #{transformer_block.1} parent=1 // pred_region
      _
    $region21: #{transformer_block.1} parent=1 // pred_fallthru
      _
    // Predicated region
    $region22: #{transformer_block.1} parent=1 // pred_check
      _
    $region23: #{transformer_block.1} parent=1 // pred_check_branch
      %28 = sbr.rel (0) target = $region25
    $region24: #{transformer_block.1} parent=1 // pred_region
      _
    $region25: #{transformer_block.1} parent=1 // pred_fallthru
      _
    // Predicated region
    $region26: #{transformer_block.1} parent=1 // pred_check
      _
    $region27: #{transformer_block.1} parent=1 // pred_check_branch
      %30 = sbr.rel (0) target = $region29
    $region28: #{transformer_block.1} parent=1 // pred_region
      %s32 = ssub.s32 32, 32
      %33 = vsyncadd [#allocation3], %s32
      %s34 = sshll.u32 [#allocation2], 4
      %s35 = int_to_ptr.vmem [resolvable:$true] %s34
      %40 = dma.hbm_to_vmem [thread:$0]  %s6, 32, %s35, [#allocation3], 16, 16, 1
    $region29: #{transformer_block.1} parent=1 // pred_fallthru
      _
    // Predicated region
    $region30: #{transformer_block.1} parent=1 // pred_check
      _
    $region31: #{transformer_block.1} parent=1 // pred_check_branch
      %42 = sbr.rel (0) target = $region33
    $region32: #{transformer_block.1} parent=1 // pred_region
      _
    $region33: #{transformer_block.1} parent=1 // pred_fallthru
      _
    // Predicated region
    $region34: #{transformer_block.1} parent=1 // pred_check
      _
    $region35: #{transformer_block.1} parent=1 // pred_check_branch
      %44 = sbr.rel (0) target = $region37
    $region36: #{transformer_block.1} parent=1 // pred_region
      %s46 = ssub.s32 32, 32
      %47 = vsyncadd [#allocation5], %s46
      %s48 = sshll.u32 [#allocation4], 4
      %s49 = int_to_ptr.vmem [resolvable:$true] %s48
      %54 = dma.hbm_to_vmem [thread:$0]  %s8, 32, %s49, [#allocation5], 16, 16, 1
    $region37: #{transformer_block.1} parent=1 // pred_fallthru
      _
    // Predicated region
    $region38: #{transformer_block.1} parent=1 // pred_check
      _
    $region39: #{transformer_block.1} parent=1 // pred_check_branch
      %56 = sbr.rel (0) target = $region41
    $region40: #{transformer_block.1} parent=1 // pred_region
      _
    $region41: #{transformer_block.1} parent=1 // pred_fallthru
      _
    // Predicated region
    $region42: #{transformer_block.1} parent=1 // pred_check
      _
    $region43: #{transformer_block.1} parent=1 // pred_check_branch
      %58 = sbr.rel (0) target = $region45
    $region44: #{transformer_block.1} parent=1 // pred_region
      %59 = dma.done [#allocation3], 32
    $region45: #{transformer_block.1} parent=1 // pred_fallthru
      _
    // Predicated region
    $region46: #{transformer_block.1} parent=1 // pred_check
      _
    $region47: #{transformer_block.1} parent=1 // pred_check_branch
      %61 = sbr.rel (0) target = $region49
    $region48: #{transformer_block.1} parent=1 // pred_region
      %62 = dma.done [#allocation5], 32
    $region49: #{transformer_block.1} parent=1 // pred_fallthru
      _
    %v64 = vld [vmem:[%s0] sm:$0xf]
    %s65 = scalar_lea.vmem %s0, 4
    %v66 = vld [vmem:[%s65] sm:$0xf]
    %68 = vrot.lane.b32.xlu0 %v66, 16
    %v69 = vpop.permute.xlu0 %68
    %vm71 = vcmask 130048
    %v72 = vsel %vm71, %v64, %v69
    %v73 = vld [vmem:[%s1] sm:$0xf]
    %v74 = vld [vmem:[%s1 + $0x4] sm:$0xf]
    %v75 = vld [vmem:[%s1 + $0x8] sm:$0xf]
    %v76 = vld [vmem:[%s1 + $0xc] sm:$0xf]
    %v77 = vpack.c.bf16 %v72, %v72
    %v78 = vld [vmem:[%s2] sm:$0xff]
    %v79 = vld [vmem:[%s2 + $0x8] sm:$0xff]
    %v80 = vld [vmem:[%s2 + $0x10] sm:$0xff]
    %v81 = vld [vmem:[%s2 + $0x18] sm:$0xff]
    %83 = vset.pattern.permute.xlu0 0
    %84 = vperm.xlu0 %83, %v78
    %v85 = vpop.permute.xlu0 %84
    %88 = vset.pattern.permute.xlu0 0
    %89 = vperm.xlu0 %88, %v79
    %v90 = vpop.permute.xlu0 %89
    %93 = vset.pattern.permute.xlu0 0
    %94 = vperm.xlu0 %93, %v80
    %v95 = vpop.permute.xlu0 %94
    %98 = vset.pattern.permute.xlu0 0
    %99 = vperm.xlu0 %98, %v81
    %v100 = vpop.permute.xlu0 %99
    %v106 = vunpack.c.l.b16 %v73
    %v107 = vunpack.c.l.b16 %v74
    %v108 = vunpack.c.l.b16 %v75
    %v109 = vunpack.c.l.b16 %v76
    %v110 = vpack.c.b16 %v107, %v106
    %v111 = vpack.c.b16 %v109, %v108
    %vm112 = vcmask 31744
    %v114 = vsel %vm112, %v110, 0
    %v117 = vsel %vm112, %v111, 0
    %vm119 = vcmask 1041408
    %v121 = vsel %vm119, %v77, 0
    %123 = vmatprep.subr.bf16.mxu0 0
    %124 = vmatpush1.bf16.msra.mxu0 %v121
    %125 = vmatprep.subr.bf16.mxu0 0
    %126 = vmatpush1.bf16.msra.mxu0 0
    %127 = vmatprep.subr.bf16.mxu0 0
    %128 = vmatpush1.bf16.msra.mxu0 0
    %129 = vmatprep.subr.bf16.mxu0 0
    %130 = vmatpush1.bf16.msra.mxu0 0
    %131 = vmatprep.subr.bf16.mxu0 0
    %132 = vmatpush1.bf16.msra.mxu0 0
    %133 = vmatprep.subr.bf16.mxu0 0
    %134 = vmatpush1.bf16.msra.mxu0 0
    %135 = vmatprep.subr.bf16.mxu0 0
    %136 = vmatpush1.bf16.msra.mxu0 0
    %137 = vmatprep.subr.bf16.mxu0 0
    %138 = vmatpush1.bf16.msra.mxu0 0
    %139 = vmatprep.subr.bf16.mxu0 0
    %140 = vmatpush1.bf16.msra.mxu0 0
    %141 = vmatprep.subr.bf16.mxu0 0
    %142 = vmatpush1.bf16.msra.mxu0 0
    %143 = vmatprep.subr.bf16.mxu0 0
    %144 = vmatpush1.bf16.msra.mxu0 0
    %145 = vmatprep.subr.bf16.mxu0 0
    %146 = vmatpush1.bf16.msra.mxu0 0
    %147 = vmatprep.subr.bf16.mxu0 0
    %148 = vmatpush1.bf16.msra.mxu0 0
    %149 = vmatprep.subr.bf16.mxu0 0
    %150 = vmatpush1.bf16.msra.mxu0 0
    %151 = vmatprep.subr.bf16.mxu0 0
    %152 = vmatpush1.bf16.msra.mxu0 0
    %153 = vmatprep.subr.bf16.mxu0 0
    %154 = vmatpush1.bf16.msra.mxu0 0
    %155 = vmatprep.mubr.bf16.mxu0 0
    %156 = vmatmul.mubr.bf16.gmra.mrb[0].mxu0 %v114
    %v157 = vpop.f32.mrb[0].mxu0
    %v158 = vadd.f32 %v85, %v157
    %v159 = vpop.f32.mrb[0].mxu0
    %v160 = vpop.f32.mrb[0].mxu0
    %v161 = vadd.f32 %v90, %v160
    %v162 = vpop.f32.mrb[0].mxu0
    %163 = vmatprep.mubr.bf16.mxu0 0
    %164 = vmatmul.mubr.bf16.gmra.mrb[0].mxu0 %v117
    %v165 = vpop.f32.mrb[0].mxu0
    %v166 = vadd.f32 %v95, %v165
    %v167 = vpop.f32.mrb[0].mxu0
    %v168 = vpop.f32.mrb[0].mxu0
    %v169 = vadd.f32 %v100, %v168
    %v170 = vpop.f32.mrb[0].mxu0
    %171 = vdwg.mxu0
    %v172 = vmul.f32 %v158, 0.5
    %v173 = vmul.f32 %v161, 0.5
    %v174 = vmul.f32 %v166, 0.5
    %v175 = vmul.f32 %v169, 0.5
    %v176 = vtanh.pop %v172
    %v177 = vtanh.pop %v173
    %v178 = vtanh.pop %v174
    %v179 = vtanh.pop %v175
    %v180 = vadd.f32 %v176, 1.0
    %v181 = vadd.f32 %v177, 1.0
    %v182 = vadd.f32 %v178, 1.0
    %v183 = vadd.f32 %v179, 1.0
    %v184 = vmul.f32 %v180, 0.5
    %v185 = vmul.f32 %v181, 0.5
    %v186 = vmul.f32 %v182, 0.5
    %v187 = vmul.f32 %v183, 0.5
    %v188 = vmul.f32 %v158, %v184
    %v189 = vmul.f32 %v161, %v185
    %v190 = vmul.f32 %v166, %v186
    %v191 = vmul.f32 %v169, %v187
    %192 = vxpose.xlu0.b32.start [1/16] %v188, 128
    %193 = vxpose.xlu0.b32.cont [2/16] %v189, 128
    %194 = vxpose.xlu0.b32.cont [3/16] %v190, 128
    %195 = vxpose.xlu0.b32.cont [4/16] %v191, 128
    %196 = vxpose.xlu0.b32.cont [5/16] 0.0, 128
    %197 = vxpose.xlu0.b32.cont [6/16] 0.0, 128
    %198 = vxpose.xlu0.b32.cont [7/16] 0.0, 128
    %199 = vxpose.xlu0.b32.cont [8/16] 0.0, 128
    %200 = vxpose.xlu0.b32.cont [9/16] 0.0, 128
    %201 = vxpose.xlu0.b32.cont [10/16] 0.0, 128
    %202 = vxpose.xlu0.b32.cont [11/16] 0.0, 128
    %203 = vxpose.xlu0.b32.cont [12/16] 0.0, 128
    %204 = vxpose.xlu0.b32.cont [13/16] 0.0, 128
    %205 = vxpose.xlu0.b32.cont [14/16] 0.0, 128
    %206 = vxpose.xlu0.b32.cont [15/16] 0.0, 128
    %207 = vxpose.xlu0.b32.end [16/16] 0.0, 128
    %v208 = vpop.trf.xlu0
    %v209 = vpop.trf.xlu0
    %v210 = vpop.trf.xlu0
    %v211 = vpop.trf.xlu0
    %v212 = vpop.trf.xlu0
    %v213 = vpop.trf.xlu0
    %v214 = vpop.trf.xlu0
    %v215 = vpop.trf.xlu0
    %v216 = vpop.trf.xlu0
    %v217 = vpop.trf.xlu0
    %v218 = vpop.trf.xlu0
    %v219 = vpop.trf.xlu0
    %v220 = vpop.trf.xlu0
    %v221 = vpop.trf.xlu0
    %v222 = vpop.trf.xlu0
    %v223 = vpop.trf.xlu0
    %v224 = vpack.c.bf16 %v209, %v208
    %v225 = vpack.c.bf16 %v211, %v210
    %v226 = vld [vmem:[%s3] sm:$0xf]
    %v227 = vld [vmem:[%s3 + $0x4] sm:$0xf]
    %v228 = vld [vmem:[%s3 + $0x8] sm:$0xf]
    %v229 = vld [vmem:[%s3 + $0xc] sm:$0xf]
    %v234 = vunpack.c.l.b16 %v226
    %v235 = vunpack.c.l.b16 %v227
    %v236 = vunpack.c.l.b16 %v228
    %v237 = vunpack.c.l.b16 %v229
    %v238 = vpack.c.b16 %v235, %v234
    %v239 = vpack.c.b16 %v237, %v236
    %vm242 = vcmask 261120
    %v244 = vsel %vm242, %v224, 0
    %v247 = vsel %vm242, %v225, 0
    %249 = vmatprep.subr.bf16.mxu0 0
    %250 = vmatpush1.bf16.msra.mxu0 %v238
    %251 = vmatprep.subr.bf16.mxu0 0
    %252 = vmatpush1.bf16.msra.mxu0 %v239
    %253 = vmatprep.subr.bf16.mxu0 0
    %254 = vmatpush1.bf16.msra.mxu0 0
    %255 = vmatprep.subr.bf16.mxu0 0
    %256 = vmatpush1.bf16.msra.mxu0 0
    %257 = vmatprep.subr.bf16.mxu0 0
    %258 = vmatpush1.bf16.msra.mxu0 0
    %259 = vmatprep.subr.bf16.mxu0 0
    %260 = vmatpush1.bf16.msra.mxu0 0
    %261 = vmatprep.subr.bf16.mxu0 0
    %262 = vmatpush1.bf16.msra.mxu0 0
    %263 = vmatprep.subr.bf16.mxu0 0
    %264 = vmatpush1.bf16.msra.mxu0 0
    %265 = vmatprep.subr.bf16.mxu0 0
    %266 = vmatpush1.bf16.msra.mxu0 0
    %267 = vmatprep.subr.bf16.mxu0 0
    %268 = vmatpush1.bf16.msra.mxu0 0
    %269 = vmatprep.subr.bf16.mxu0 0
    %270 = vmatpush1.bf16.msra.mxu0 0
    %271 = vmatprep.subr.bf16.mxu0 0
    %272 = vmatpush1.bf16.msra.mxu0 0
    %273 = vmatprep.subr.bf16.mxu0 0
    %274 = vmatpush1.bf16.msra.mxu0 0
    %275 = vmatprep.subr.bf16.mxu0 0
    %276 = vmatpush1.bf16.msra.mxu0 0
    %277 = vmatprep.subr.bf16.mxu0 0
    %278 = vmatpush1.bf16.msra.mxu0 0
    %279 = vmatprep.subr.bf16.mxu0 0
    %280 = vmatpush1.bf16.msra.mxu0 0
    %281 = vmatprep.mubr.bf16.mxu0 0
    %282 = vmatmul.mubr.bf16.gmra.mrb[0].mxu0 %v244
    %v283 = vpop.f32.mrb[0].mxu0
    %v284 = vadd.f32 0.0, %v283
    %v285 = vpop.f32.mrb[0].mxu0
    %v286 = vpop.f32.mrb[0].mxu0
    %v287 = vadd.f32 0.0, %v286
    %v288 = vpop.f32.mrb[0].mxu0
    %289 = vmatprep.mubr.bf16.mxu0 0
    %290 = vmatmul.mubr.bf16.gmra.mrb[0].mxu0 %v247
    %v291 = vpop.f32.mrb[0].mxu0
    %v292 = vadd.f32 0.0, %v291
    %v293 = vpop.f32.mrb[0].mxu0
    %v294 = vpop.f32.mrb[0].mxu0
    %v295 = vadd.f32 0.0, %v294
    %v296 = vpop.f32.mrb[0].mxu0
    %297 = vdwg.mxu0
    %v298 = vadd.f32 %v208, %v284
    %v299 = vadd.f32 %v209, %v287
    %v300 = vadd.f32 %v210, %v292
    %v301 = vadd.f32 %v211, %v295
    %v302 = vld [vmem:[%s4] sm:$0x1]
    %v304 = vlaneseq
    %v305 = vshrl.u32 %v304, 7
    %v306 = vsub.s32 0, %v305
    %v307 = vrot.slane %v302, %v306
    %v309 = vadd.f32 %v298, %v307
    %v310 = vadd.f32 %v299, %v307
    %v311 = vadd.f32 %v300, %v307
    %v312 = vadd.f32 %v301, %v307
    %v313 = vlaneseq
    %v314 = vshrl.u32 %v313, 7
    %v315 = vadd.s32 %v314, 8
    %v316 = vadd.s32 %v314, 16
    %v317 = vadd.s32 %v314, 24
    %v318 = vlaneseq
    %v319 = vand.u32 %v318, 127
    %vm320 = vcmp.ge.s32.totalorder %v314, 0
    %vm321 = vcmp.ge.s32.totalorder %v315, 0
    %vm322 = vcmp.ge.s32.totalorder %v316, 0
    %vm323 = vcmp.ge.s32.totalorder %v317, 0
    %vm324 = vcmp.lt.s32.totalorder %v314, 16
    %vm325 = vcmp.lt.s32.totalorder %v315, 16
    %vm326 = vcmp.lt.s32.totalorder %v316, 16
    %vm327 = vcmp.lt.s32.totalorder %v317, 16
    %vm328 = vmand %vm320, %vm324
    %vm329 = vmand %vm321, %vm325
    %vm330 = vmand %vm322, %vm326
    %vm331 = vmand %vm323, %vm327
    %vm332 = vcmp.ge.s32.totalorder %v319, 0
    %vm333 = vcmp.lt.s32.totalorder %v319, 16
    %vm334 = vmand %vm332, %vm333
    %vm335 = vmand %vm328, %vm334
    %vm336 = vmand %vm329, %vm334
    %vm337 = vmand %vm330, %vm334
    %vm338 = vmand %vm331, %vm334
    %vm339 = vcmp.ge.s32.totalorder %v314, 16
    %vm340 = vcmp.ge.s32.totalorder %v315, 16
    %vm341 = vcmp.ge.s32.totalorder %v316, 16
    %vm342 = vcmp.ge.s32.totalorder %v317, 16
    %vm343 = vcmp.lt.s32.totalorder %v314, 32
    %vm344 = vcmp.lt.s32.totalorder %v315, 32
    %vm345 = vcmp.lt.s32.totalorder %v316, 32
    %vm346 = vcmp.lt.s32.totalorder %v317, 32
    %vm347 = vmand %vm339, %vm343
    %vm348 = vmand %vm340, %vm344
    %vm349 = vmand %vm341, %vm345
    %vm350 = vmand %vm342, %vm346
    %vm351 = vcmp.ge.s32.totalorder %v319, 16
    %vm352 = vcmp.lt.s32.totalorder %v319, 32
    %vm353 = vmand %vm351, %vm352
    %vm354 = vmand %vm347, %vm353
    %vm355 = vmand %vm348, %vm353
    %vm356 = vmand %vm349, %vm353
    %vm357 = vmand %vm350, %vm353
    %vm358 = vmor %vm335, %vm354
    %vm359 = vmor %vm336, %vm355
    %vm360 = vmor %vm337, %vm356
    %vm361 = vmor %vm338, %vm357
    %v362 = vsel %vm358, 0.0, -1e+30
    %v363 = vsel %vm359, 0.0, -1e+30
    %v364 = vsel %vm360, 0.0, -1e+30
    %v365 = vsel %vm361, 0.0, -1e+30
    %v366 = vpack.c.bf16 %v310, %v309
    %v367 = vpack.c.bf16 %v312, %v311
    %v368 = vld [vmem:[%s5] sm:$0xf]
    %v369 = vld [vmem:[%s5 + $0x4] sm:$0xf]
    %v370 = vld [vmem:[%s5 + $0x8] sm:$0xf]
    %v371 = vld [vmem:[%s5 + $0xc] sm:$0xf]
    %v372 = vld [vmem:[#allocation2] sm:$0x1]
    %v374 = vlaneseq
    %v375 = vshrl.u32 %v374, 7
    %v376 = vsub.s32 0, %v375
    %v377 = vrot.slane %v372, %v376
    %v383 = vunpack.c.l.b16 %v368
    %v384 = vunpack.c.l.b16 %v369
    %v385 = vunpack.c.l.b16 %v370
    %v386 = vunpack.c.l.b16 %v371
    %v387 = vpack.c.b16 %v384, %v383
    %v388 = vpack.c.b16 %v386, %v385
    %v392 = vsel %vm242, %v366, 0
    %v395 = vsel %vm242, %v367, 0
    %397 = vmatprep.subr.bf16.mxu0 0
    %398 = vmatpush1.bf16.msra.mxu0 %v387
    %399 = vmatprep.subr.bf16.mxu0 0
    %400 = vmatpush1.bf16.msra.mxu0 %v388
    %401 = vmatprep.subr.bf16.mxu0 0
    %402 = vmatpush1.bf16.msra.mxu0 0
    %403 = vmatprep.subr.bf16.mxu0 0
    %404 = vmatpush1.bf16.msra.mxu0 0
    %405 = vmatprep.subr.bf16.mxu0 0
    %406 = vmatpush1.bf16.msra.mxu0 0
    %407 = vmatprep.subr.bf16.mxu0 0
    %408 = vmatpush1.bf16.msra.mxu0 0
    %409 = vmatprep.subr.bf16.mxu0 0
    %410 = vmatpush1.bf16.msra.mxu0 0
    %411 = vmatprep.subr.bf16.mxu0 0
    %412 = vmatpush1.bf16.msra.mxu0 0
    %413 = vmatprep.subr.bf16.mxu0 0
    %414 = vmatpush1.bf16.msra.mxu0 0
    %415 = vmatprep.subr.bf16.mxu0 0
    %416 = vmatpush1.bf16.msra.mxu0 0
    %417 = vmatprep.subr.bf16.mxu0 0
    %418 = vmatpush1.bf16.msra.mxu0 0
    %419 = vmatprep.subr.bf16.mxu0 0
    %420 = vmatpush1.bf16.msra.mxu0 0
    %421 = vmatprep.subr.bf16.mxu0 0
    %422 = vmatpush1.bf16.msra.mxu0 0
    %423 = vmatprep.subr.bf16.mxu0 0
    %424 = vmatpush1.bf16.msra.mxu0 0
    %425 = vmatprep.subr.bf16.mxu0 0
    %426 = vmatpush1.bf16.msra.mxu0 0
    %427 = vmatprep.subr.bf16.mxu0 0
    %428 = vmatpush1.bf16.msra.mxu0 0
    %429 = vmatprep.mubr.bf16.mxu0 0
    %430 = vmatmul.mubr.bf16.gmra.mrb[0].mxu0 %v392
    %v431 = vpop.f32.mrb[0].mxu0
    %v432 = vadd.f32 %v377, %v431
    %v433 = vpop.f32.mrb[0].mxu0
    %v434 = vpop.f32.mrb[0].mxu0
    %v435 = vadd.f32 %v377, %v434
    %v436 = vpop.f32.mrb[0].mxu0
    %437 = vmatprep.mubr.bf16.mxu0 0
    %438 = vmatmul.mubr.bf16.gmra.mrb[0].mxu0 %v395
    %v439 = vpop.f32.mrb[0].mxu0
    %v440 = vadd.f32 %v377, %v439
    %v441 = vpop.f32.mrb[0].mxu0
    %v442 = vpop.f32.mrb[0].mxu0
    %v443 = vadd.f32 %v377, %v442
    %v444 = vpop.f32.mrb[0].mxu0
    %445 = vdwg.mxu0
    %v446 = vpack.c.bf16 %v435, %v432
    %v447 = vpack.c.bf16 %v443, %v440
    %450 = vrot.lane.b32.xlu0 %v446, 96
    %v451 = vpop.permute.xlu0 %450
    %452 = vrot.lane.b32.xlu0 %v447, 96
    %v453 = vpop.permute.xlu0 %452
    %vm454 = vcmask 64512
    %v456 = vsel %vm454, %v446, 0
    %v459 = vsel %vm454, %v447, 0
    %v462 = vsel %vm454, %v451, 0
    %v465 = vsel %vm454, %v453, 0
    %467 = vmatprep.subr.bf16.mxu0 0
    %468 = vmatpush1.bf16.xpose.msra.mxu0 %v462
    %469 = vmatprep.subr.bf16.mxu0 0
    %470 = vmatpush1.bf16.xpose.msra.mxu0 %v465
    %471 = vmatprep.subr.bf16.mxu0 0
    %472 = vmatpush1.bf16.xpose.msra.mxu0 0
    %473 = vmatprep.subr.bf16.mxu0 0
    %474 = vmatpush1.bf16.xpose.msra.mxu0 0
    %475 = vmatprep.subr.bf16.mxu0 0
    %476 = vmatpush1.bf16.xpose.msra.mxu0 0
    %477 = vmatprep.subr.bf16.mxu0 0
    %478 = vmatpush1.bf16.xpose.msra.mxu0 0
    %479 = vmatprep.subr.bf16.mxu0 0
    %480 = vmatpush1.bf16.xpose.msra.mxu0 0
    %481 = vmatprep.subr.bf16.mxu0 0
    %482 = vmatpush1.bf16.xpose.msra.mxu0 0
    %483 = vmatprep.subr.bf16.mxu0 0
    %484 = vmatpush1.bf16.xpose.msra.mxu0 0
    %485 = vmatprep.subr.bf16.mxu0 0
    %486 = vmatpush1.bf16.xpose.msra.mxu0 0
    %487 = vmatprep.subr.bf16.mxu0 0
    %488 = vmatpush1.bf16.xpose.msra.mxu0 0
    %489 = vmatprep.subr.bf16.mxu0 0
    %490 = vmatpush1.bf16.xpose.msra.mxu0 0
    %491 = vmatprep.subr.bf16.mxu0 0
    %492 = vmatpush1.bf16.xpose.msra.mxu0 0
    %493 = vmatprep.subr.bf16.mxu0 0
    %494 = vmatpush1.bf16.xpose.msra.mxu0 0
    %495 = vmatprep.subr.bf16.mxu0 0
    %496 = vmatpush1.bf16.xpose.msra.mxu0 0
    %497 = vmatprep.subr.bf16.mxu0 0
    %498 = vmatpush1.bf16.xpose.msra.mxu0 0
    %499 = vmatprep.mubr.bf16.mxu0 0
    %500 = vmatmul.mubr.bf16.gmra.mrb[0].mxu0 %v456
    %v501 = vpop.f32.mrb[0].mxu0
    %v502 = vadd.f32 %v362, %v501
    %v503 = vpop.f32.mrb[0].mxu0
    %v504 = vpop.f32.mrb[0].mxu0
    %v505 = vadd.f32 %v363, %v504
    %v506 = vpop.f32.mrb[0].mxu0
    %507 = vmatprep.mubr.bf16.mxu0 0
    %508 = vmatmul.mubr.bf16.gmra.mrb[0].mxu0 %v459
    %v509 = vpop.f32.mrb[0].mxu0
    %v510 = vadd.f32 %v364, %v509
    %v511 = vpop.f32.mrb[0].mxu0
    %v512 = vpop.f32.mrb[0].mxu0
    %v513 = vadd.f32 %v365, %v512
    %v514 = vpop.f32.mrb[0].mxu0
    %515 = vdwg.mxu0
    %v516 = vsel %vm242, %v502, -inf
    %517 = vmax.xlane.f32.xlu0 %v516
    %v518 = vpop.xlane.xlu0 %517
    %v519 = vsel %vm242, %v505, -inf
    %520 = vmax.xlane.f32.xlu0 %v519
    %v521 = vpop.xlane.xlu0 %520
    %v522 = vsel %vm242, %v510, -inf
    %523 = vmax.xlane.f32.xlu0 %v522
    %v524 = vpop.xlane.xlu0 %523
    %v525 = vsel %vm242, %v513, -inf
    %526 = vmax.xlane.f32.xlu0 %v525
    %v527 = vpop.xlane.xlu0 %526
    %v528 = vsub.f32 %v502, %v518
    %v529 = vsub.f32 %v505, %v521
    %v530 = vsub.f32 %v510, %v524
    %v531 = vsub.f32 %v513, %v527
    %v532 = vmul.f32 %v528, 1.442695
    %v533 = vpow.pop %v532
    %v534 = vmul.f32 %v529, 1.442695
    %v535 = vpow.pop %v534
    %v536 = vmul.f32 %v530, 1.442695
    %v537 = vpow.pop %v536
    %v538 = vmul.f32 %v531, 1.442695
    %v539 = vpow.pop %v538
    %v540 = vsel %vm242, %v533, 0.0
    %541 = vadd.xlane.f32.xlu0 %v540
    %v542 = vpop.xlane.xlu0 %541
    %v543 = vsel %vm242, %v535, 0.0
    %544 = vadd.xlane.f32.xlu0 %v543
    %v545 = vpop.xlane.xlu0 %544
    %v546 = vsel %vm242, %v537, 0.0
    %547 = vadd.xlane.f32.xlu0 %v546
    %v548 = vpop.xlane.xlu0 %547
    %v549 = vsel %vm242, %v539, 0.0
    %550 = vadd.xlane.f32.xlu0 %v549
    %v551 = vpop.xlane.xlu0 %550
    %v552 = vrcp.pop %v542
    %v553 = vrcp.pop %v545
    %v554 = vrcp.pop %v548
    %v555 = vrcp.pop %v551
    %v556 = vmul.f32 %v533, %v552
    %v557 = vmul.f32 %v535, %v553
    %v558 = vmul.f32 %v537, %v554
    %v559 = vmul.f32 %v539, %v555
    %v560 = vpack.c.bf16 %v557, %v556
    %v561 = vpack.c.bf16 %v559, %v558
    %562 = vrot.lane.b32.xlu0 %v446, 64
    %v563 = vpop.permute.xlu0 %562
    %564 = vrot.lane.b32.xlu0 %v447, 64
    %v565 = vpop.permute.xlu0 %564
    %v569 = vsel %vm242, %v560, 0
    %v572 = vsel %vm242, %v561, 0
    %574 = vmatprep.subr.bf16.mxu0 0
    %575 = vmatpush1.bf16.msra.mxu0 %v563
    %576 = vmatprep.subr.bf16.mxu0 0
    %577 = vmatpush1.bf16.msra.mxu0 %v565
    %578 = vmatprep.subr.bf16.mxu0 0
    %579 = vmatpush1.bf16.msra.mxu0 0
    %580 = vmatprep.subr.bf16.mxu0 0
    %581 = vmatpush1.bf16.msra.mxu0 0
    %582 = vmatprep.subr.bf16.mxu0 0
    %583 = vmatpush1.bf16.msra.mxu0 0
    %584 = vmatprep.subr.bf16.mxu0 0
    %585 = vmatpush1.bf16.msra.mxu0 0
    %586 = vmatprep.subr.bf16.mxu0 0
    %587 = vmatpush1.bf16.msra.mxu0 0
    %588 = vmatprep.subr.bf16.mxu0 0
    %589 = vmatpush1.bf16.msra.mxu0 0
    %590 = vmatprep.subr.bf16.mxu0 0
    %591 = vmatpush1.bf16.msra.mxu0 0
    %592 = vmatprep.subr.bf16.mxu0 0
    %593 = vmatpush1.bf16.msra.mxu0 0
    %594 = vmatprep.subr.bf16.mxu0 0
    %595 = vmatpush1.bf16.msra.mxu0 0
    %596 = vmatprep.subr.bf16.mxu0 0
    %597 = vmatpush1.bf16.msra.mxu0 0
    %598 = vmatprep.subr.bf16.mxu0 0
    %599 = vmatpush1.bf16.msra.mxu0 0
    %600 = vmatprep.subr.bf16.mxu0 0
    %601 = vmatpush1.bf16.msra.mxu0 0
    %602 = vmatprep.subr.bf16.mxu0 0
    %603 = vmatpush1.bf16.msra.mxu0 0
    %604 = vmatprep.subr.bf16.mxu0 0
    %605 = vmatpush1.bf16.msra.mxu0 0
    %606 = vmatprep.mubr.bf16.mxu0 0
    %607 = vmatmul.mubr.bf16.gmra.mrb[0].mxu0 %v569
    %v608 = vpop.f32.mrb[0].mxu0
    %v609 = vadd.f32 0.0, %v608
    %v610 = vpop.f32.mrb[0].mxu0
    %v611 = vpop.f32.mrb[0].mxu0
    %v612 = vadd.f32 0.0, %v611
    %v613 = vpop.f32.mrb[0].mxu0
    %614 = vmatprep.mubr.bf16.mxu0 0
    %615 = vmatmul.mubr.bf16.gmra.mrb[0].mxu0 %v572
    %v616 = vpop.f32.mrb[0].mxu0
    %v617 = vadd.f32 0.0, %v616
    %v618 = vpop.f32.mrb[0].mxu0
    %v619 = vpop.f32.mrb[0].mxu0
    %v620 = vadd.f32 0.0, %v619
    %v621 = vpop.f32.mrb[0].mxu0
    %622 = vdwg.mxu0
    %623 = vrot.lane.b32.xlu0 %v446, 120
    %v624 = vpop.permute.xlu0 %623
    %625 = vrot.lane.b32.xlu0 %v447, 120
    %v626 = vpop.permute.xlu0 %625
    %627 = vrot.lane.b32.xlu0 %v446, 88
    %v628 = vpop.permute.xlu0 %627
    %629 = vrot.lane.b32.xlu0 %v447, 88
    %v630 = vpop.permute.xlu0 %629
    %v632 = vsel %vm454, %v624, 0
    %v635 = vsel %vm454, %v626, 0
    %v638 = vsel %vm454, %v628, 0
    %v641 = vsel %vm454, %v630, 0
    %643 = vmatprep.subr.bf16.mxu0 0
    %644 = vmatpush1.bf16.xpose.msra.mxu0 %v638
    %645 = vmatprep.subr.bf16.mxu0 0
    %646 = vmatpush1.bf16.xpose.msra.mxu0 %v641
    %647 = vmatprep.subr.bf16.mxu0 0
    %648 = vmatpush1.bf16.xpose.msra.mxu0 0
    %649 = vmatprep.subr.bf16.mxu0 0
    %650 = vmatpush1.bf16.xpose.msra.mxu0 0
    %651 = vmatprep.subr.bf16.mxu0 0
    %652 = vmatpush1.bf16.xpose.msra.mxu0 0
    %653 = vmatprep.subr.bf16.mxu0 0
    %654 = vmatpush1.bf16.xpose.msra.mxu0 0
    %655 = vmatprep.subr.bf16.mxu0 0
    %656 = vmatpush1.bf16.xpose.msra.mxu0 0
    %657 = vmatprep.subr.bf16.mxu0 0
    %658 = vmatpush1.bf16.xpose.msra.mxu0 0
    %659 = vmatprep.subr.bf16.mxu0 0
    %660 = vmatpush1.bf16.xpose.msra.mxu0 0
    %661 = vmatprep.subr.bf16.mxu0 0
    %662 = vmatpush1.bf16.xpose.msra.mxu0 0
    %663 = vmatprep.subr.bf16.mxu0 0
    %664 = vmatpush1.bf16.xpose.msra.mxu0 0
    %665 = vmatprep.subr.bf16.mxu0 0
    %666 = vmatpush1.bf16.xpose.msra.mxu0 0
    %667 = vmatprep.subr.bf16.mxu0 0
    %668 = vmatpush1.bf16.xpose.msra.mxu0 0
    %669 = vmatprep.subr.bf16.mxu0 0
    %670 = vmatpush1.bf16.xpose.msra.mxu0 0
    %671 = vmatprep.subr.bf16.mxu0 0
    %672 = vmatpush1.bf16.xpose.msra.mxu0 0
    %673 = vmatprep.subr.bf16.mxu0 0
    %674 = vmatpush1.bf16.xpose.msra.mxu0 0
    %675 = vmatprep.mubr.bf16.mxu0 0
    %676 = vmatmul.mubr.bf16.gmra.mrb[0].mxu0 %v632
    %v677 = vpop.f32.mrb[0].mxu0
    %v678 = vadd.f32 %v362, %v677
    %v679 = vpop.f32.mrb[0].mxu0
    %v680 = vpop.f32.mrb[0].mxu0
    %v681 = vadd.f32 %v363, %v680
    %v682 = vpop.f32.mrb[0].mxu0
    %683 = vmatprep.mubr.bf16.mxu0 0
    %684 = vmatmul.mubr.bf16.gmra.mrb[0].mxu0 %v635
    %v685 = vpop.f32.mrb[0].mxu0
    %v686 = vadd.f32 %v364, %v685
    %v687 = vpop.f32.mrb[0].mxu0
    %v688 = vpop.f32.mrb[0].mxu0
    %v689 = vadd.f32 %v365, %v688
    %v690 = vpop.f32.mrb[0].mxu0
    %691 = vdwg.mxu0
    %v692 = vsel %vm242, %v678, -inf
    %693 = vmax.xlane.f32.xlu0 %v692
    %v694 = vpop.xlane.xlu0 %693
    %v695 = vsel %vm242, %v681, -inf
    %696 = vmax.xlane.f32.xlu0 %v695
    %v697 = vpop.xlane.xlu0 %696
    %v698 = vsel %vm242, %v686, -inf
    %699 = vmax.xlane.f32.xlu0 %v698
    %v700 = vpop.xlane.xlu0 %699
    %v701 = vsel %vm242, %v689, -inf
    %702 = vmax.xlane.f32.xlu0 %v701
    %v703 = vpop.xlane.xlu0 %702
    %v704 = vsub.f32 %v678, %v694
    %v705 = vsub.f32 %v681, %v697
    %v706 = vsub.f32 %v686, %v700
    %v707 = vsub.f32 %v689, %v703
    %v708 = vmul.f32 %v704, 1.442695
    %v709 = vpow.pop %v708
    %v710 = vmul.f32 %v705, 1.442695
    %v711 = vpow.pop %v710
    %v712 = vmul.f32 %v706, 1.442695
    %v713 = vpow.pop %v712
    %v714 = vmul.f32 %v707, 1.442695
    %v715 = vpow.pop %v714
    %v716 = vsel %vm242, %v709, 0.0
    %717 = vadd.xlane.f32.xlu0 %v716
    %v718 = vpop.xlane.xlu0 %717
    %v719 = vsel %vm242, %v711, 0.0
    %720 = vadd.xlane.f32.xlu0 %v719
    %v721 = vpop.xlane.xlu0 %720
    %v722 = vsel %vm242, %v713, 0.0
    %723 = vadd.xlane.f32.xlu0 %v722
    %v724 = vpop.xlane.xlu0 %723
    %v725 = vsel %vm242, %v715, 0.0
    %726 = vadd.xlane.f32.xlu0 %v725
    %v727 = vpop.xlane.xlu0 %726
    %v728 = vrcp.pop %v718
    %v729 = vrcp.pop %v721
    %v730 = vrcp.pop %v724
    %v731 = vrcp.pop %v727
    %v732 = vmul.f32 %v709, %v728
    %v733 = vmul.f32 %v711, %v729
    %v734 = vmul.f32 %v713, %v730
    %v735 = vmul.f32 %v715, %v731
    %v736 = vpack.c.bf16 %v733, %v732
    %v737 = vpack.c.bf16 %v735, %v734
    %738 = vrot.lane.b32.xlu0 %v446, 56
    %v739 = vpop.permute.xlu0 %738
    %740 = vrot.lane.b32.xlu0 %v447, 56
    %v741 = vpop.permute.xlu0 %740
    %v745 = vsel %vm242, %v736, 0
    %v748 = vsel %vm242, %v737, 0
    %750 = vmatprep.subr.bf16.mxu0 0
    %751 = vmatpush1.bf16.msra.mxu0 %v739
    %752 = vmatprep.subr.bf16.mxu0 0
    %753 = vmatpush1.bf16.msra.mxu0 %v741
    %754 = vmatprep.subr.bf16.mxu0 0
    %755 = vmatpush1.bf16.msra.mxu0 0
    %756 = vmatprep.subr.bf16.mxu0 0
    %757 = vmatpush1.bf16.msra.mxu0 0
    %758 = vmatprep.subr.bf16.mxu0 0
    %759 = vmatpush1.bf16.msra.mxu0 0
    %760 = vmatprep.subr.bf16.mxu0 0
    %761 = vmatpush1.bf16.msra.mxu0 0
    %762 = vmatprep.subr.bf16.mxu0 0
    %763 = vmatpush1.bf16.msra.mxu0 0
    %764 = vmatprep.subr.bf16.mxu0 0
    %765 = vmatpush1.bf16.msra.mxu0 0
    %766 = vmatprep.subr.bf16.mxu0 0
    %767 = vmatpush1.bf16.msra.mxu0 0
    %768 = vmatprep.subr.bf16.mxu0 0
    %769 = vmatpush1.bf16.msra.mxu0 0
    %770 = vmatprep.subr.bf16.mxu0 0
    %771 = vmatpush1.bf16.msra.mxu0 0
    %772 = vmatprep.subr.bf16.mxu0 0
    %773 = vmatpush1.bf16.msra.mxu0 0
    %774 = vmatprep.subr.bf16.mxu0 0
    %775 = vmatpush1.bf16.msra.mxu0 0
    %776 = vmatprep.subr.bf16.mxu0 0
    %777 = vmatpush1.bf16.msra.mxu0 0
    %778 = vmatprep.subr.bf16.mxu0 0
    %779 = vmatpush1.bf16.msra.mxu0 0
    %780 = vmatprep.subr.bf16.mxu0 0
    %781 = vmatpush1.bf16.msra.mxu0 0
    %782 = vmatprep.mubr.bf16.mxu0 0
    %783 = vmatmul.mubr.bf16.gmra.mrb[0].mxu0 %v745
    %v784 = vpop.f32.mrb[0].mxu0
    %v785 = vadd.f32 0.0, %v784
    %v786 = vpop.f32.mrb[0].mxu0
    %v787 = vpop.f32.mrb[0].mxu0
    %v788 = vadd.f32 0.0, %v787
    %v789 = vpop.f32.mrb[0].mxu0
    %790 = vmatprep.mubr.bf16.mxu0 0
    %791 = vmatmul.mubr.bf16.gmra.mrb[0].mxu0 %v748
    %v792 = vpop.f32.mrb[0].mxu0
    %v793 = vadd.f32 0.0, %v792
    %v794 = vpop.f32.mrb[0].mxu0
    %v795 = vpop.f32.mrb[0].mxu0
    %v796 = vadd.f32 0.0, %v795
    %v797 = vpop.f32.mrb[0].mxu0
    %798 = vdwg.mxu0
    %799 = vrot.lane.b32.xlu0 %v446, 112
    %v800 = vpop.permute.xlu0 %799
    %801 = vrot.lane.b32.xlu0 %v447, 112
    %v802 = vpop.permute.xlu0 %801
    %803 = vrot.lane.b32.xlu0 %v446, 80
    %v804 = vpop.permute.xlu0 %803
    %805 = vrot.lane.b32.xlu0 %v447, 80
    %v806 = vpop.permute.xlu0 %805
    %v808 = vsel %vm454, %v800, 0
    %v811 = vsel %vm454, %v802, 0
    %v814 = vsel %vm454, %v804, 0
    %v817 = vsel %vm454, %v806, 0
    %819 = vmatprep.subr.bf16.mxu0 0
    %820 = vmatpush1.bf16.xpose.msra.mxu0 %v814
    %821 = vmatprep.subr.bf16.mxu0 0
    %822 = vmatpush1.bf16.xpose.msra.mxu0 %v817
    %823 = vmatprep.subr.bf16.mxu0 0
    %824 = vmatpush1.bf16.xpose.msra.mxu0 0
    %825 = vmatprep.subr.bf16.mxu0 0
    %826 = vmatpush1.bf16.xpose.msra.mxu0 0
    %827 = vmatprep.subr.bf16.mxu0 0
    %828 = vmatpush1.bf16.xpose.msra.mxu0 0
    %829 = vmatprep.subr.bf16.mxu0 0
    %830 = vmatpush1.bf16.xpose.msra.mxu0 0
    %831 = vmatprep.subr.bf16.mxu0 0
    %832 = vmatpush1.bf16.xpose.msra.mxu0 0
    %833 = vmatprep.subr.bf16.mxu0 0
    %834 = vmatpush1.bf16.xpose.msra.mxu0 0
    %835 = vmatprep.subr.bf16.mxu0 0
    %836 = vmatpush1.bf16.xpose.msra.mxu0 0
    %837 = vmatprep.subr.bf16.mxu0 0
    %838 = vmatpush1.bf16.xpose.msra.mxu0 0
    %839 = vmatprep.subr.bf16.mxu0 0
    %840 = vmatpush1.bf16.xpose.msra.mxu0 0
    %841 = vmatprep.subr.bf16.mxu0 0
    %842 = vmatpush1.bf16.xpose.msra.mxu0 0
    %843 = vmatprep.subr.bf16.mxu0 0
    %844 = vmatpush1.bf16.xpose.msra.mxu0 0
    %845 = vmatprep.subr.bf16.mxu0 0
    %846 = vmatpush1.bf16.xpose.msra.mxu0 0
    %847 = vmatprep.subr.bf16.mxu0 0
    %848 = vmatpush1.bf16.xpose.msra.mxu0 0
    %849 = vmatprep.subr.bf16.mxu0 0
    %850 = vmatpush1.bf16.xpose.msra.mxu0 0
    %851 = vmatprep.mubr.bf16.mxu0 0
    %852 = vmatmul.mubr.bf16.gmra.mrb[0].mxu0 %v808
    %v853 = vpop.f32.mrb[0].mxu0
    %v854 = vadd.f32 %v362, %v853
    %v855 = vpop.f32.mrb[0].mxu0
    %v856 = vpop.f32.mrb[0].mxu0
    %v857 = vadd.f32 %v363, %v856
    %v858 = vpop.f32.mrb[0].mxu0
    %859 = vmatprep.mubr.bf16.mxu0 0
    %860 = vmatmul.mubr.bf16.gmra.mrb[0].mxu0 %v811
    %v861 = vpop.f32.mrb[0].mxu0
    %v862 = vadd.f32 %v364, %v861
    %v863 = vpop.f32.mrb[0].mxu0
    %v864 = vpop.f32.mrb[0].mxu0
    %v865 = vadd.f32 %v365, %v864
    %v866 = vpop.f32.mrb[0].mxu0
    %867 = vdwg.mxu0
    %v868 = vsel %vm242, %v854, -inf
    %869 = vmax.xlane.f32.xlu0 %v868
    %v870 = vpop.xlane.xlu0 %869
    %v871 = vsel %vm242, %v857, -inf
    %872 = vmax.xlane.f32.xlu0 %v871
    %v873 = vpop.xlane.xlu0 %872
    %v874 = vsel %vm242, %v862, -inf
    %875 = vmax.xlane.f32.xlu0 %v874
    %v876 = vpop.xlane.xlu0 %875
    %v877 = vsel %vm242, %v865, -inf
    %878 = vmax.xlane.f32.xlu0 %v877
    %v879 = vpop.xlane.xlu0 %878
    %v880 = vsub.f32 %v854, %v870
    %v881 = vsub.f32 %v857, %v873
    %v882 = vsub.f32 %v862, %v876
    %v883 = vsub.f32 %v865, %v879
    %v884 = vmul.f32 %v880, 1.442695
    %v885 = vpow.pop %v884
    %v886 = vmul.f32 %v881, 1.442695
    %v887 = vpow.pop %v886
    %v888 = vmul.f32 %v882, 1.442695
    %v889 = vpow.pop %v888
    %v890 = vmul.f32 %v883, 1.442695
    %v891 = vpow.pop %v890
    %v892 = vsel %vm242, %v885, 0.0
    %893 = vadd.xlane.f32.xlu0 %v892
    %v894 = vpop.xlane.xlu0 %893
    %v895 = vsel %vm242, %v887, 0.0
    %896 = vadd.xlane.f32.xlu0 %v895
    %v897 = vpop.xlane.xlu0 %896
    %v898 = vsel %vm242, %v889, 0.0
    %899 = vadd.xlane.f32.xlu0 %v898
    %v900 = vpop.xlane.xlu0 %899
    %v901 = vsel %vm242, %v891, 0.0
    %902 = vadd.xlane.f32.xlu0 %v901
    %v903 = vpop.xlane.xlu0 %902
    %v904 = vrcp.pop %v894
    %v905 = vrcp.pop %v897
    %v906 = vrcp.pop %v900
    %v907 = vrcp.pop %v903
    %v908 = vmul.f32 %v885, %v904
    %v909 = vmul.f32 %v887, %v905
    %v910 = vmul.f32 %v889, %v906
    %v911 = vmul.f32 %v891, %v907
    %v912 = vpack.c.bf16 %v909, %v908
    %v913 = vpack.c.bf16 %v911, %v910
    %914 = vrot.lane.b32.xlu0 %v446, 48
    %v915 = vpop.permute.xlu0 %914
    %916 = vrot.lane.b32.xlu0 %v447, 48
    %v917 = vpop.permute.xlu0 %916
    %v921 = vsel %vm242, %v912, 0
    %v924 = vsel %vm242, %v913, 0
    %926 = vmatprep.subr.bf16.mxu0 0
    %927 = vmatpush1.bf16.msra.mxu0 %v915
    %928 = vmatprep.subr.bf16.mxu0 0
    %929 = vmatpush1.bf16.msra.mxu0 %v917
    %930 = vmatprep.subr.bf16.mxu0 0
    %931 = vmatpush1.bf16.msra.mxu0 0
    %932 = vmatprep.subr.bf16.mxu0 0
    %933 = vmatpush1.bf16.msra.mxu0 0
    %934 = vmatprep.subr.bf16.mxu0 0
    %935 = vmatpush1.bf16.msra.mxu0 0
    %936 = vmatprep.subr.bf16.mxu0 0
    %937 = vmatpush1.bf16.msra.mxu0 0
    %938 = vmatprep.subr.bf16.mxu0 0
    %939 = vmatpush1.bf16.msra.mxu0 0
    %940 = vmatprep.subr.bf16.mxu0 0
    %941 = vmatpush1.bf16.msra.mxu0 0
    %942 = vmatprep.subr.bf16.mxu0 0
    %943 = vmatpush1.bf16.msra.mxu0 0
    %944 = vmatprep.subr.bf16.mxu0 0
    %945 = vmatpush1.bf16.msra.mxu0 0
    %946 = vmatprep.subr.bf16.mxu0 0
    %947 = vmatpush1.bf16.msra.mxu0 0
    %948 = vmatprep.subr.bf16.mxu0 0
    %949 = vmatpush1.bf16.msra.mxu0 0
    %950 = vmatprep.subr.bf16.mxu0 0
    %951 = vmatpush1.bf16.msra.mxu0 0
    %952 = vmatprep.subr.bf16.mxu0 0
    %953 = vmatpush1.bf16.msra.mxu0 0
    %954 = vmatprep.subr.bf16.mxu0 0
    %955 = vmatpush1.bf16.msra.mxu0 0
    %956 = vmatprep.subr.bf16.mxu0 0
    %957 = vmatpush1.bf16.msra.mxu0 0
    %958 = vmatprep.mubr.bf16.mxu0 0
    %959 = vmatmul.mubr.bf16.gmra.mrb[0].mxu0 %v921
    %v960 = vpop.f32.mrb[0].mxu0
    %v961 = vadd.f32 0.0, %v960
    %v962 = vpop.f32.mrb[0].mxu0
    %v963 = vpop.f32.mrb[0].mxu0
    %v964 = vadd.f32 0.0, %v963
    %v965 = vpop.f32.mrb[0].mxu0
    %966 = vmatprep.mubr.bf16.mxu0 0
    %967 = vmatmul.mubr.bf16.gmra.mrb[0].mxu0 %v924
    %v968 = vpop.f32.mrb[0].mxu0
    %v969 = vadd.f32 0.0, %v968
    %v970 = vpop.f32.mrb[0].mxu0
    %v971 = vpop.f32.mrb[0].mxu0
    %v972 = vadd.f32 0.0, %v971
    %v973 = vpop.f32.mrb[0].mxu0
    %974 = vdwg.mxu0
    %975 = vrot.lane.b32.xlu0 %v446, 104
    %v976 = vpop.permute.xlu0 %975
    %977 = vrot.lane.b32.xlu0 %v447, 104
    %v978 = vpop.permute.xlu0 %977
    %979 = vrot.lane.b32.xlu0 %v446, 72
    %v980 = vpop.permute.xlu0 %979
    %981 = vrot.lane.b32.xlu0 %v447, 72
    %v982 = vpop.permute.xlu0 %981
    %v984 = vsel %vm454, %v976, 0
    %v987 = vsel %vm454, %v978, 0
    %v990 = vsel %vm454, %v980, 0
    %v993 = vsel %vm454, %v982, 0
    %995 = vmatprep.subr.bf16.mxu0 0
    %996 = vmatpush1.bf16.xpose.msra.mxu0 %v990
    %997 = vmatprep.subr.bf16.mxu0 0
    %998 = vmatpush1.bf16.xpose.msra.mxu0 %v993
    %999 = vmatprep.subr.bf16.mxu0 0
    %1000 = vmatpush1.bf16.xpose.msra.mxu0 0
    %1001 = vmatprep.subr.bf16.mxu0 0
    %1002 = vmatpush1.bf16.xpose.msra.mxu0 0
    %1003 = vmatprep.subr.bf16.mxu0 0
    %1004 = vmatpush1.bf16.xpose.msra.mxu0 0
    %1005 = vmatprep.subr.bf16.mxu0 0
    %1006 = vmatpush1.bf16.xpose.msra.mxu0 0
    %1007 = vmatprep.subr.bf16.mxu0 0
    %1008 = vmatpush1.bf16.xpose.msra.mxu0 0
    %1009 = vmatprep.subr.bf16.mxu0 0
    %1010 = vmatpush1.bf16.xpose.msra.mxu0 0
    %1011 = vmatprep.subr.bf16.mxu0 0
    %1012 = vmatpush1.bf16.xpose.msra.mxu0 0
    %1013 = vmatprep.subr.bf16.mxu0 0
    %1014 = vmatpush1.bf16.xpose.msra.mxu0 0
    %1015 = vmatprep.subr.bf16.mxu0 0
    %1016 = vmatpush1.bf16.xpose.msra.mxu0 0
    %1017 = vmatprep.subr.bf16.mxu0 0
    %1018 = vmatpush1.bf16.xpose.msra.mxu0 0
    %1019 = vmatprep.subr.bf16.mxu0 0
    %1020 = vmatpush1.bf16.xpose.msra.mxu0 0
    %1021 = vmatprep.subr.bf16.mxu0 0
    %1022 = vmatpush1.bf16.xpose.msra.mxu0 0
    %1023 = vmatprep.subr.bf16.mxu0 0
    %1024 = vmatpush1.bf16.xpose.msra.mxu0 0
    %1025 = vmatprep.subr.bf16.mxu0 0
    %1026 = vmatpush1.bf16.xpose.msra.mxu0 0
    %1027 = vmatprep.mubr.bf16.mxu0 0
    %1028 = vmatmul.mubr.bf16.gmra.mrb[0].mxu0 %v984
    %v1029 = vpop.f32.mrb[0].mxu0
    %v1030 = vadd.f32 %v362, %v1029
    %v1031 = vpop.f32.mrb[0].mxu0
    %v1032 = vpop.f32.mrb[0].mxu0
    %v1033 = vadd.f32 %v363, %v1032
    %v1034 = vpop.f32.mrb[0].mxu0
    %1035 = vmatprep.mubr.bf16.mxu0 0
    %1036 = vmatmul.mubr.bf16.gmra.mrb[0].mxu0 %v987
    %v1037 = vpop.f32.mrb[0].mxu0
    %v1038 = vadd.f32 %v364, %v1037
    %v1039 = vpop.f32.mrb[0].mxu0
    %v1040 = vpop.f32.mrb[0].mxu0
    %v1041 = vadd.f32 %v365, %v1040
    %v1042 = vpop.f32.mrb[0].mxu0
    %1043 = vdwg.mxu0
    %v1044 = vsel %vm242, %v1030, -inf
    %1045 = vmax.xlane.f32.xlu0 %v1044
    %v1046 = vpop.xlane.xlu0 %1045
    %v1047 = vsel %vm242, %v1033, -inf
    %1048 = vmax.xlane.f32.xlu0 %v1047
    %v1049 = vpop.xlane.xlu0 %1048
    %v1050 = vsel %vm242, %v1038, -inf
    %1051 = vmax.xlane.f32.xlu0 %v1050
    %v1052 = vpop.xlane.xlu0 %1051
    %v1053 = vsel %vm242, %v1041, -inf
    %1054 = vmax.xlane.f32.xlu0 %v1053
    %v1055 = vpop.xlane.xlu0 %1054
    %v1056 = vsub.f32 %v1030, %v1046
    %v1057 = vsub.f32 %v1033, %v1049
    %v1058 = vsub.f32 %v1038, %v1052
    %v1059 = vsub.f32 %v1041, %v1055
    %v1060 = vmul.f32 %v1056, 1.442695
    %v1061 = vpow.pop %v1060
    %v1062 = vmul.f32 %v1057, 1.442695
    %v1063 = vpow.pop %v1062
    %v1064 = vmul.f32 %v1058, 1.442695
    %v1065 = vpow.pop %v1064
    %v1066 = vmul.f32 %v1059, 1.442695
    %v1067 = vpow.pop %v1066
    %v1068 = vsel %vm242, %v1061, 0.0
    %1069 = vadd.xlane.f32.xlu0 %v1068
    %v1070 = vpop.xlane.xlu0 %1069
    %v1071 = vsel %vm242, %v1063, 0.0
    %1072 = vadd.xlane.f32.xlu0 %v1071
    %v1073 = vpop.xlane.xlu0 %1072
    %v1074 = vsel %vm242, %v1065, 0.0
    %1075 = vadd.xlane.f32.xlu0 %v1074
    %v1076 = vpop.xlane.xlu0 %1075
    %v1077 = vsel %vm242, %v1067, 0.0
    %1078 = vadd.xlane.f32.xlu0 %v1077
    %v1079 = vpop.xlane.xlu0 %1078
    %v1080 = vrcp.pop %v1070
    %v1081 = vrcp.pop %v1073
    %v1082 = vrcp.pop %v1076
    %v1083 = vrcp.pop %v1079
    %v1084 = vmul.f32 %v1061, %v1080
    %v1085 = vmul.f32 %v1063, %v1081
    %v1086 = vmul.f32 %v1065, %v1082
    %v1087 = vmul.f32 %v1067, %v1083
    %v1088 = vpack.c.bf16 %v1085, %v1084
    %v1089 = vpack.c.bf16 %v1087, %v1086
    %1090 = vrot.lane.b32.xlu0 %v446, 40
    %v1091 = vpop.permute.xlu0 %1090
    %1092 = vrot.lane.b32.xlu0 %v447, 40
    %v1093 = vpop.permute.xlu0 %1092
    %v1097 = vsel %vm242, %v1088, 0
    %v1100 = vsel %vm242, %v1089, 0
    %1102 = vmatprep.subr.bf16.mxu0 0
    %1103 = vmatpush1.bf16.msra.mxu0 %v1091
    %1104 = vmatprep.subr.bf16.mxu0 0
    %1105 = vmatpush1.bf16.msra.mxu0 %v1093
    %1106 = vmatprep.subr.bf16.mxu0 0
    %1107 = vmatpush1.bf16.msra.mxu0 0
    %1108 = vmatprep.subr.bf16.mxu0 0
    %1109 = vmatpush1.bf16.msra.mxu0 0
    %1110 = vmatprep.subr.bf16.mxu0 0
    %1111 = vmatpush1.bf16.msra.mxu0 0
    %1112 = vmatprep.subr.bf16.mxu0 0
    %1113 = vmatpush1.bf16.msra.mxu0 0
    %1114 = vmatprep.subr.bf16.mxu0 0
    %1115 = vmatpush1.bf16.msra.mxu0 0
    %1116 = vmatprep.subr.bf16.mxu0 0
    %1117 = vmatpush1.bf16.msra.mxu0 0
    %1118 = vmatprep.subr.bf16.mxu0 0
    %1119 = vmatpush1.bf16.msra.mxu0 0
    %1120 = vmatprep.subr.bf16.mxu0 0
    %1121 = vmatpush1.bf16.msra.mxu0 0
    %1122 = vmatprep.subr.bf16.mxu0 0
    %1123 = vmatpush1.bf16.msra.mxu0 0
    %1124 = vmatprep.subr.bf16.mxu0 0
    %1125 = vmatpush1.bf16.msra.mxu0 0
    %1126 = vmatprep.subr.bf16.mxu0 0
    %1127 = vmatpush1.bf16.msra.mxu0 0
    %1128 = vmatprep.subr.bf16.mxu0 0
    %1129 = vmatpush1.bf16.msra.mxu0 0
    %1130 = vmatprep.subr.bf16.mxu0 0
    %1131 = vmatpush1.bf16.msra.mxu0 0
    %1132 = vmatprep.subr.bf16.mxu0 0
    %1133 = vmatpush1.bf16.msra.mxu0 0
    %1134 = vmatprep.mubr.bf16.mxu0 0
    %1135 = vmatmul.mubr.bf16.gmra.mrb[0].mxu0 %v1097
    %v1136 = vpop.f32.mrb[0].mxu0
    %v1137 = vadd.f32 0.0, %v1136
    %v1138 = vpop.f32.mrb[0].mxu0
    %v1139 = vpop.f32.mrb[0].mxu0
    %v1140 = vadd.f32 0.0, %v1139
    %v1141 = vpop.f32.mrb[0].mxu0
    %1142 = vmatprep.mubr.bf16.mxu0 0
    %1143 = vmatmul.mubr.bf16.gmra.mrb[0].mxu0 %v1100
    %v1144 = vpop.f32.mrb[0].mxu0
    %v1145 = vadd.f32 0.0, %v1144
    %v1146 = vpop.f32.mrb[0].mxu0
    %v1147 = vpop.f32.mrb[0].mxu0
    %v1148 = vadd.f32 0.0, %v1147
    %v1149 = vpop.f32.mrb[0].mxu0
    %1150 = vdwg.mxu0
    %1155 = vrot.lane.b32.xlu0 %v785, 8
    %v1156 = vpop.permute.xlu0 %1155
    %1157 = vrot.lane.b32.xlu0 %v788, 8
    %v1158 = vpop.permute.xlu0 %1157
    %1159 = vrot.lane.b32.xlu0 %v793, 8
    %v1160 = vpop.permute.xlu0 %1159
    %1161 = vrot.lane.b32.xlu0 %v796, 8
    %v1162 = vpop.permute.xlu0 %1161
    %1171 = vrot.lane.b32.xlu0 %v961, 16
    %v1172 = vpop.permute.xlu0 %1171
    %1173 = vrot.lane.b32.xlu0 %v964, 16
    %v1174 = vpop.permute.xlu0 %1173
    %1175 = vrot.lane.b32.xlu0 %v969, 16
    %v1176 = vpop.permute.xlu0 %1175
    %1177 = vrot.lane.b32.xlu0 %v972, 16
    %v1178 = vpop.permute.xlu0 %1177
    %1187 = vrot.lane.b32.xlu0 %v1137, 24
    %v1188 = vpop.permute.xlu0 %1187
    %1189 = vrot.lane.b32.xlu0 %v1140, 24
    %v1190 = vpop.permute.xlu0 %1189
    %1191 = vrot.lane.b32.xlu0 %v1145, 24
    %v1192 = vpop.permute.xlu0 %1191
    %1193 = vrot.lane.b32.xlu0 %v1148, 24
    %v1194 = vpop.permute.xlu0 %1193
    %v1199 = vsel %vm454, %v609, %v1156
    %v1200 = vsel %vm454, %v612, %v1158
    %v1201 = vsel %vm454, %v617, %v1160
    %v1202 = vsel %vm454, %v620, %v1162
    %v1203 = vsel %vm71, %v1199, %v1172
    %v1204 = vsel %vm71, %v1200, %v1174
    %v1205 = vsel %vm71, %v1201, %v1176
    %v1206 = vsel %vm71, %v1202, %v1178
    %vm1207 = vcmask 195584
    %v1208 = vsel %vm1207, %v1203, %v1188
    %v1209 = vsel %vm1207, %v1204, %v1190
    %v1210 = vsel %vm1207, %v1205, %v1192
    %v1211 = vsel %vm1207, %v1206, %v1194
    %v1212 = vpack.c.bf16 %v1209, %v1208
    %v1213 = vpack.c.bf16 %v1211, %v1210
    %v1214 = vld [vmem:[%s7] sm:$0xf]
    %v1215 = vld [vmem:[%s7 + $0x4] sm:$0xf]
    %v1216 = vld [vmem:[%s7 + $0x8] sm:$0xf]
    %v1217 = vld [vmem:[%s7 + $0xc] sm:$0xf]
    %v1218 = vld [vmem:[#allocation4] sm:$0x1]
    %v1220 = vlaneseq
    %v1221 = vshrl.u32 %v1220, 7
    %v1222 = vsub.s32 0, %v1221
    %v1223 = vrot.slane %v1218, %v1222
    %v1229 = vunpack.c.l.b16 %v1214
    %v1230 = vunpack.c.l.b16 %v1215
    %v1231 = vunpack.c.l.b16 %v1216
    %v1232 = vunpack.c.l.b16 %v1217
    %v1233 = vpack.c.b16 %v1230, %v1229
    %v1234 = vpack.c.b16 %v1232, %v1231
    %v1238 = vsel %vm242, %v1212, 0
    %v1241 = vsel %vm242, %v1213, 0
    %1243 = vmatprep.subr.bf16.mxu0 0
    %1244 = vmatpush1.bf16.msra.mxu0 %v1233
    %1245 = vmatprep.subr.bf16.mxu0 0
    %1246 = vmatpush1.bf16.msra.mxu0 %v1234
    %1247 = vmatprep.subr.bf16.mxu0 0
    %1248 = vmatpush1.bf16.msra.mxu0 0
    %1249 = vmatprep.subr.bf16.mxu0 0
    %1250 = vmatpush1.bf16.msra.mxu0 0
    %1251 = vmatprep.subr.bf16.mxu0 0
    %1252 = vmatpush1.bf16.msra.mxu0 0
    %1253 = vmatprep.subr.bf16.mxu0 0
    %1254 = vmatpush1.bf16.msra.mxu0 0
    %1255 = vmatprep.subr.bf16.mxu0 0
    %1256 = vmatpush1.bf16.msra.mxu0 0
    %1257 = vmatprep.subr.bf16.mxu0 0
    %1258 = vmatpush1.bf16.msra.mxu0 0
    %1259 = vmatprep.subr.bf16.mxu0 0
    %1260 = vmatpush1.bf16.msra.mxu0 0
    %1261 = vmatprep.subr.bf16.mxu0 0
    %1262 = vmatpush1.bf16.msra.mxu0 0
    %1263 = vmatprep.subr.bf16.mxu0 0
    %1264 = vmatpush1.bf16.msra.mxu0 0
    %1265 = vmatprep.subr.bf16.mxu0 0
    %1266 = vmatpush1.bf16.msra.mxu0 0
    %1267 = vmatprep.subr.bf16.mxu0 0
    %1268 = vmatpush1.bf16.msra.mxu0 0
    %1269 = vmatprep.subr.bf16.mxu0 0
    %1270 = vmatpush1.bf16.msra.mxu0 0
    %1271 = vmatprep.subr.bf16.mxu0 0
    %1272 = vmatpush1.bf16.msra.mxu0 0
    %1273 = vmatprep.subr.bf16.mxu0 0
    %1274 = vmatpush1.bf16.msra.mxu0 0
    %1275 = vmatprep.mubr.bf16.mxu0 0
    %1276 = vmatmul.mubr.bf16.gmra.mrb[0].mxu0 %v1238
    %v1277 = vpop.f32.mrb[0].mxu0
    %v1278 = vadd.f32 %v1223, %v1277
    %v1279 = vpop.f32.mrb[0].mxu0
    %v1280 = vpop.f32.mrb[0].mxu0
    %v1281 = vadd.f32 %v1223, %v1280
    %v1282 = vpop.f32.mrb[0].mxu0
    %1283 = vmatprep.mubr.bf16.mxu0 0
    %1284 = vmatmul.mubr.bf16.gmra.mrb[0].mxu0 %v1241
    %v1285 = vpop.f32.mrb[0].mxu0
    %v1286 = vadd.f32 %v1223, %v1285
    %v1287 = vpop.f32.mrb[0].mxu0
    %v1288 = vpop.f32.mrb[0].mxu0
    %v1289 = vadd.f32 %v1223, %v1288
    %v1290 = vpop.f32.mrb[0].mxu0
    %1291 = vdwg.mxu0
    %v1292 = vadd.f32 %v1278, %v309
    %v1293 = vadd.f32 %v1281, %v310
    %v1294 = vadd.f32 %v1286, %v311
    %v1295 = vadd.f32 %v1289, %v312
    %v1296 = vpack.c.bf16 %v1293, %v1292
    %v1297 = vpack.c.bf16 %v1295, %v1294
    %v1298 = vld [vmem:[%s9] sm:$0xf]
    %v1299 = vld [vmem:[%s9 + $0x4] sm:$0xf]
    %v1300 = vld [vmem:[%s9 + $0x8] sm:$0xf]
    %v1301 = vld [vmem:[%s9 + $0xc] sm:$0xf]
    %v1306 = vunpack.c.l.b16 %v1298
    %v1307 = vunpack.c.l.b16 %v1299
    %v1308 = vunpack.c.l.b16 %v1300
    %v1309 = vunpack.c.l.b16 %v1301
    %v1310 = vpack.c.b16 %v1307, %v1306
    %v1311 = vpack.c.b16 %v1309, %v1308
    %v1315 = vsel %vm242, %v1296, 0
    %v1318 = vsel %vm242, %v1297, 0
    %1320 = vmatprep.subr.bf16.mxu0 0
    %1321 = vmatpush1.bf16.msra.mxu0 %v1310
    %1322 = vmatprep.subr.bf16.mxu0 0
    %1323 = vmatpush1.bf16.msra.mxu0 %v1311
    %1324 = vmatprep.subr.bf16.mxu0 0
    %1325 = vmatpush1.bf16.msra.mxu0 0
    %1326 = vmatprep.subr.bf16.mxu0 0
    %1327 = vmatpush1.bf16.msra.mxu0 0
    %1328 = vmatprep.subr.bf16.mxu0 0
    %1329 = vmatpush1.bf16.msra.mxu0 0
    %1330 = vmatprep.subr.bf16.mxu0 0
    %1331 = vmatpush1.bf16.msra.mxu0 0
    %1332 = vmatprep.subr.bf16.mxu0 0
    %1333 = vmatpush1.bf16.msra.mxu0 0
    %1334 = vmatprep.subr.bf16.mxu0 0
    %1335 = vmatpush1.bf16.msra.mxu0 0
    %1336 = vmatprep.subr.bf16.mxu0 0
    %1337 = vmatpush1.bf16.msra.mxu0 0
    %1338 = vmatprep.subr.bf16.mxu0 0
    %1339 = vmatpush1.bf16.msra.mxu0 0
    %1340 = vmatprep.subr.bf16.mxu0 0
    %1341 = vmatpush1.bf16.msra.mxu0 0
    %1342 = vmatprep.subr.bf16.mxu0 0
    %1343 = vmatpush1.bf16.msra.mxu0 0
    %1344 = vmatprep.subr.bf16.mxu0 0
    %1345 = vmatpush1.bf16.msra.mxu0 0
    %1346 = vmatprep.subr.bf16.mxu0 0
    %1347 = vmatpush1.bf16.msra.mxu0 0
    %1348 = vmatprep.subr.bf16.mxu0 0
    %1349 = vmatpush1.bf16.msra.mxu0 0
    %1350 = vmatprep.subr.bf16.mxu0 0
    %1351 = vmatpush1.bf16.msra.mxu0 0
    %1352 = vmatprep.mubr.bf16.mxu0 0
    %1353 = vmatmul.mubr.bf16.gmra.mrb[0].mxu0 %v1315
    %v1354 = vpop.f32.mrb[0].mxu0
    %v1355 = vadd.f32 %v1292, %v1354
    %v1356 = vpop.f32.mrb[0].mxu0
    %v1357 = vpop.f32.mrb[0].mxu0
    %v1358 = vadd.f32 %v1293, %v1357
    %v1359 = vpop.f32.mrb[0].mxu0
    %1360 = vmatprep.mubr.bf16.mxu0 0
    %1361 = vmatmul.mubr.bf16.gmra.mrb[0].mxu0 %v1318
    %v1362 = vpop.f32.mrb[0].mxu0
    %v1363 = vadd.f32 %v1294, %v1362
    %v1364 = vpop.f32.mrb[0].mxu0
    %v1365 = vpop.f32.mrb[0].mxu0
    %v1366 = vadd.f32 %v1295, %v1365
    %v1367 = vpop.f32.mrb[0].mxu0
    %1368 = vdwg.mxu0
    %v1369 = vpack.c.bf16 %v1358, %v1355
    %v1370 = vpack.c.bf16 %v1366, %v1363
    %s1371 = scalar_lea.vmem %s5, 16
    %v1372 = vld [vmem:[%s1371] sm:$0xf]
    %v1373 = vld [vmem:[%s1371 + $0x4] sm:$0xf]
    %v1374 = vld [vmem:[%s1371 + $0x8] sm:$0xf]
    %v1375 = vld [vmem:[%s1371 + $0xc] sm:$0xf]
    %s1376 = scalar_lea.vmem [#allocation2], 1
    %v1377 = vld [vmem:[%s1376] sm:$0x1]
    %v1379 = vlaneseq
    %v1380 = vshrl.u32 %v1379, 7
    %v1381 = vsub.s32 0, %v1380
    %v1382 = vrot.slane %v1377, %v1381
    %v1388 = vunpack.c.l.b16 %v1372
    %v1389 = vunpack.c.l.b16 %v1373
    %v1390 = vunpack.c.l.b16 %v1374
    %v1391 = vunpack.c.l.b16 %v1375
    %v1392 = vpack.c.b16 %v1389, %v1388
    %v1393 = vpack.c.b16 %v1391, %v1390
    %v1397 = vsel %vm242, %v1369, 0
    %v1400 = vsel %vm242, %v1370, 0
    %1402 = vmatprep.subr.bf16.mxu0 0
    %1403 = vmatpush1.bf16.msra.mxu0 %v1392
    %1404 = vmatprep.subr.bf16.mxu0 0
    %1405 = vmatpush1.bf16.msra.mxu0 %v1393
    %1406 = vmatprep.subr.bf16.mxu0 0
    %1407 = vmatpush1.bf16.msra.mxu0 0
    %1408 = vmatprep.subr.bf16.mxu0 0
    %1409 = vmatpush1.bf16.msra.mxu0 0
    %1410 = vmatprep.subr.bf16.mxu0 0
    %1411 = vmatpush1.bf16.msra.mxu0 0
    %1412 = vmatprep.subr.bf16.mxu0 0
    %1413 = vmatpush1.bf16.msra.mxu0 0
    %1414 = vmatprep.subr.bf16.mxu0 0
    %1415 = vmatpush1.bf16.msra.mxu0 0
    %1416 = vmatprep.subr.bf16.mxu0 0
    %1417 = vmatpush1.bf16.msra.mxu0 0
    %1418 = vmatprep.subr.bf16.mxu0 0
    %1419 = vmatpush1.bf16.msra.mxu0 0
    %1420 = vmatprep.subr.bf16.mxu0 0
    %1421 = vmatpush1.bf16.msra.mxu0 0
    %1422 = vmatprep.subr.bf16.mxu0 0
    %1423 = vmatpush1.bf16.msra.mxu0 0
    %1424 = vmatprep.subr.bf16.mxu0 0
    %1425 = vmatpush1.bf16.msra.mxu0 0
    %1426 = vmatprep.subr.bf16.mxu0 0
    %1427 = vmatpush1.bf16.msra.mxu0 0
    %1428 = vmatprep.subr.bf16.mxu0 0
    %1429 = vmatpush1.bf16.msra.mxu0 0
    %1430 = vmatprep.subr.bf16.mxu0 0
    %1431 = vmatpush1.bf16.msra.mxu0 0
    %1432 = vmatprep.subr.bf16.mxu0 0
    %1433 = vmatpush1.bf16.msra.mxu0 0
    %1434 = vmatprep.mubr.bf16.mxu0 0
    %1435 = vmatmul.mubr.bf16.gmra.mrb[0].mxu0 %v1397
    %v1436 = vpop.f32.mrb[0].mxu0
    %v1437 = vadd.f32 %v1382, %v1436
    %v1438 = vpop.f32.mrb[0].mxu0
    %v1439 = vpop.f32.mrb[0].mxu0
    %v1440 = vadd.f32 %v1382, %v1439
    %v1441 = vpop.f32.mrb[0].mxu0
    %1442 = vmatprep.mubr.bf16.mxu0 0
    %1443 = vmatmul.mubr.bf16.gmra.mrb[0].mxu0 %v1400
    %v1444 = vpop.f32.mrb[0].mxu0
    %v1445 = vadd.f32 %v1382, %v1444
    %v1446 = vpop.f32.mrb[0].mxu0
    %v1447 = vpop.f32.mrb[0].mxu0
    %v1448 = vadd.f32 %v1382, %v1447
    %v1449 = vpop.f32.mrb[0].mxu0
    %1450 = vdwg.mxu0
    %v1451 = vpack.c.bf16 %v1440, %v1437
    %v1452 = vpack.c.bf16 %v1448, %v1445
    %1455 = vrot.lane.b32.xlu0 %v1451, 96
    %v1456 = vpop.permute.xlu0 %1455
    %1457 = vrot.lane.b32.xlu0 %v1452, 96
    %v1458 = vpop.permute.xlu0 %1457
    %v1460 = vsel %vm454, %v1451, 0
    %v1463 = vsel %vm454, %v1452, 0
    %v1466 = vsel %vm454, %v1456, 0
    %v1469 = vsel %vm454, %v1458, 0
    %1471 = vmatprep.subr.bf16.mxu0 0
    %1472 = vmatpush1.bf16.xpose.msra.mxu0 %v1466
    %1473 = vmatprep.subr.bf16.mxu0 0
    %1474 = vmatpush1.bf16.xpose.msra.mxu0 %v1469
    %1475 = vmatprep.subr.bf16.mxu0 0
    %1476 = vmatpush1.bf16.xpose.msra.mxu0 0
    %1477 = vmatprep.subr.bf16.mxu0 0
    %1478 = vmatpush1.bf16.xpose.msra.mxu0 0
    %1479 = vmatprep.subr.bf16.mxu0 0
    %1480 = vmatpush1.bf16.xpose.msra.mxu0 0
    %1481 = vmatprep.subr.bf16.mxu0 0
    %1482 = vmatpush1.bf16.xpose.msra.mxu0 0
    %1483 = vmatprep.subr.bf16.mxu0 0
    %1484 = vmatpush1.bf16.xpose.msra.mxu0 0
    %1485 = vmatprep.subr.bf16.mxu0 0
    %1486 = vmatpush1.bf16.xpose.msra.mxu0 0
    %1487 = vmatprep.subr.bf16.mxu0 0
    %1488 = vmatpush1.bf16.xpose.msra.mxu0 0
    %1489 = vmatprep.subr.bf16.mxu0 0
    %1490 = vmatpush1.bf16.xpose.msra.mxu0 0
    %1491 = vmatprep.subr.bf16.mxu0 0
    %1492 = vmatpush1.bf16.xpose.msra.mxu0 0
    %1493 = vmatprep.subr.bf16.mxu0 0
    %1494 = vmatpush1.bf16.xpose.msra.mxu0 0
    %1495 = vmatprep.subr.bf16.mxu0 0
    %1496 = vmatpush1.bf16.xpose.msra.mxu0 0
    %1497 = vmatprep.subr.bf16.mxu0 0
    %1498 = vmatpush1.bf16.xpose.msra.mxu0 0
    %1499 = vmatprep.subr.bf16.mxu0 0
    %1500 = vmatpush1.bf16.xpose.msra.mxu0 0
    %1501 = vmatprep.subr.bf16.mxu0 0
    %1502 = vmatpush1.bf16.xpose.msra.mxu0 0
    %1503 = vmatprep.mubr.bf16.mxu0 0
    %1504 = vmatmul.mubr.bf16.gmra.mrb[0].mxu0 %v1460
    %v1505 = vpop.f32.mrb[0].mxu0
    %v1506 = vadd.f32 %v362, %v1505
    %v1507 = vpop.f32.mrb[0].mxu0
    %v1508 = vpop.f32.mrb[0].mxu0
    %v1509 = vadd.f32 %v363, %v1508
    %v1510 = vpop.f32.mrb[0].mxu0
    %1511 = vmatprep.mubr.bf16.mxu0 0
    %1512 = vmatmul.mubr.bf16.gmra.mrb[0].mxu0 %v1463
    %v1513 = vpop.f32.mrb[0].mxu0
    %v1514 = vadd.f32 %v364, %v1513
    %v1515 = vpop.f32.mrb[0].mxu0
    %v1516 = vpop.f32.mrb[0].mxu0
    %v1517 = vadd.f32 %v365, %v1516
    %v1518 = vpop.f32.mrb[0].mxu0
    %1519 = vdwg.mxu0
    %v1520 = vsel %vm242, %v1506, -inf
    %1521 = vmax.xlane.f32.xlu0 %v1520
    %v1522 = vpop.xlane.xlu0 %1521
    %v1523 = vsel %vm242, %v1509, -inf
    %1524 = vmax.xlane.f32.xlu0 %v1523
    %v1525 = vpop.xlane.xlu0 %1524
    %v1526 = vsel %vm242, %v1514, -inf
    %1527 = vmax.xlane.f32.xlu0 %v1526
    %v1528 = vpop.xlane.xlu0 %1527
    %v1529 = vsel %vm242, %v1517, -inf
    %1530 = vmax.xlane.f32.xlu0 %v1529
    %v1531 = vpop.xlane.xlu0 %1530
    %v1532 = vsub.f32 %v1506, %v1522
    %v1533 = vsub.f32 %v1509, %v1525
    %v1534 = vsub.f32 %v1514, %v1528
    %v1535 = vsub.f32 %v1517, %v1531
    %v1536 = vmul.f32 %v1532, 1.442695
    %v1537 = vpow.pop %v1536
    %v1538 = vmul.f32 %v1533, 1.442695
    %v1539 = vpow.pop %v1538
    %v1540 = vmul.f32 %v1534, 1.442695
    %v1541 = vpow.pop %v1540
    %v1542 = vmul.f32 %v1535, 1.442695
    %v1543 = vpow.pop %v1542
    %v1544 = vsel %vm242, %v1537, 0.0
    %1545 = vadd.xlane.f32.xlu0 %v1544
    %v1546 = vpop.xlane.xlu0 %1545
    %v1547 = vsel %vm242, %v1539, 0.0
    %1548 = vadd.xlane.f32.xlu0 %v1547
    %v1549 = vpop.xlane.xlu0 %1548
    %v1550 = vsel %vm242, %v1541, 0.0
    %1551 = vadd.xlane.f32.xlu0 %v1550
    %v1552 = vpop.xlane.xlu0 %1551
    %v1553 = vsel %vm242, %v1543, 0.0
    %1554 = vadd.xlane.f32.xlu0 %v1553
    %v1555 = vpop.xlane.xlu0 %1554
    %v1556 = vrcp.pop %v1546
    %v1557 = vrcp.pop %v1549
    %v1558 = vrcp.pop %v1552
    %v1559 = vrcp.pop %v1555
    %v1560 = vmul.f32 %v1537, %v1556
    %v1561 = vmul.f32 %v1539, %v1557
    %v1562 = vmul.f32 %v1541, %v1558
    %v1563 = vmul.f32 %v1543, %v1559
    %v1564 = vpack.c.bf16 %v1561, %v1560
    %v1565 = vpack.c.bf16 %v1563, %v1562
    %1566 = vrot.lane.b32.xlu0 %v1451, 64
    %v1567 = vpop.permute.xlu0 %1566
    %1568 = vrot.lane.b32.xlu0 %v1452, 64
    %v1569 = vpop.permute.xlu0 %1568
    %v1573 = vsel %vm242, %v1564, 0
    %v1576 = vsel %vm242, %v1565, 0
    %1578 = vmatprep.subr.bf16.mxu0 0
    %1579 = vmatpush1.bf16.msra.mxu0 %v1567
    %1580 = vmatprep.subr.bf16.mxu0 0
    %1581 = vmatpush1.bf16.msra.mxu0 %v1569
    %1582 = vmatprep.subr.bf16.mxu0 0
    %1583 = vmatpush1.bf16.msra.mxu0 0
    %1584 = vmatprep.subr.bf16.mxu0 0
    %1585 = vmatpush1.bf16.msra.mxu0 0
    %1586 = vmatprep.subr.bf16.mxu0 0
    %1587 = vmatpush1.bf16.msra.mxu0 0
    %1588 = vmatprep.subr.bf16.mxu0 0
    %1589 = vmatpush1.bf16.msra.mxu0 0
    %1590 = vmatprep.subr.bf16.mxu0 0
    %1591 = vmatpush1.bf16.msra.mxu0 0
    %1592 = vmatprep.subr.bf16.mxu0 0
    %1593 = vmatpush1.bf16.msra.mxu0 0
    %1594 = vmatprep.subr.bf16.mxu0 0
    %1595 = vmatpush1.bf16.msra.mxu0 0
    %1596 = vmatprep.subr.bf16.mxu0 0
    %1597 = vmatpush1.bf16.msra.mxu0 0
    %1598 = vmatprep.subr.bf16.mxu0 0
    %1599 = vmatpush1.bf16.msra.mxu0 0
    %1600 = vmatprep.subr.bf16.mxu0 0
    %1601 = vmatpush1.bf16.msra.mxu0 0
    %1602 = vmatprep.subr.bf16.mxu0 0
    %1603 = vmatpush1.bf16.msra.mxu0 0
    %1604 = vmatprep.subr.bf16.mxu0 0
    %1605 = vmatpush1.bf16.msra.mxu0 0
    %1606 = vmatprep.subr.bf16.mxu0 0
    %1607 = vmatpush1.bf16.msra.mxu0 0
    %1608 = vmatprep.subr.bf16.mxu0 0
    %1609 = vmatpush1.bf16.msra.mxu0 0
    %1610 = vmatprep.mubr.bf16.mxu0 0
    %1611 = vmatmul.mubr.bf16.gmra.mrb[0].mxu0 %v1573
    %v1612 = vpop.f32.mrb[0].mxu0
    %v1613 = vadd.f32 0.0, %v1612
    %v1614 = vpop.f32.mrb[0].mxu0
    %v1615 = vpop.f32.mrb[0].mxu0
    %v1616 = vadd.f32 0.0, %v1615
    %v1617 = vpop.f32.mrb[0].mxu0
    %1618 = vmatprep.mubr.bf16.mxu0 0
    %1619 = vmatmul.mubr.bf16.gmra.mrb[0].mxu0 %v1576
    %v1620 = vpop.f32.mrb[0].mxu0
    %v1621 = vadd.f32 0.0, %v1620
    %v1622 = vpop.f32.mrb[0].mxu0
    %v1623 = vpop.f32.mrb[0].mxu0
    %v1624 = vadd.f32 0.0, %v1623
    %v1625 = vpop.f32.mrb[0].mxu0
    %1626 = vdwg.mxu0
    %1627 = vrot.lane.b32.xlu0 %v1451, 120
    %v1628 = vpop.permute.xlu0 %1627
    %1629 = vrot.lane.b32.xlu0 %v1452, 120
    %v1630 = vpop.permute.xlu0 %1629
    %1631 = vrot.lane.b32.xlu0 %v1451, 88
    %v1632 = vpop.permute.xlu0 %1631
    %1633 = vrot.lane.b32.xlu0 %v1452, 88
    %v1634 = vpop.permute.xlu0 %1633
    %v1636 = vsel %vm454, %v1628, 0
    %v1639 = vsel %vm454, %v1630, 0
    %v1642 = vsel %vm454, %v1632, 0
    %v1645 = vsel %vm454, %v1634, 0
    %1647 = vmatprep.subr.bf16.mxu0 0
    %1648 = vmatpush1.bf16.xpose.msra.mxu0 %v1642
    %1649 = vmatprep.subr.bf16.mxu0 0
    %1650 = vmatpush1.bf16.xpose.msra.mxu0 %v1645
    %1651 = vmatprep.subr.bf16.mxu0 0
    %1652 = vmatpush1.bf16.xpose.msra.mxu0 0
    %1653 = vmatprep.subr.bf16.mxu0 0
    %1654 = vmatpush1.bf16.xpose.msra.mxu0 0
    %1655 = vmatprep.subr.bf16.mxu0 0
    %1656 = vmatpush1.bf16.xpose.msra.mxu0 0
    %1657 = vmatprep.subr.bf16.mxu0 0
    %1658 = vmatpush1.bf16.xpose.msra.mxu0 0
    %1659 = vmatprep.subr.bf16.mxu0 0
    %1660 = vmatpush1.bf16.xpose.msra.mxu0 0
    %1661 = vmatprep.subr.bf16.mxu0 0
    %1662 = vmatpush1.bf16.xpose.msra.mxu0 0
    %1663 = vmatprep.subr.bf16.mxu0 0
    %1664 = vmatpush1.bf16.xpose.msra.mxu0 0
    %1665 = vmatprep.subr.bf16.mxu0 0
    %1666 = vmatpush1.bf16.xpose.msra.mxu0 0
    %1667 = vmatprep.subr.bf16.mxu0 0
    %1668 = vmatpush1.bf16.xpose.msra.mxu0 0
    %1669 = vmatprep.subr.bf16.mxu0 0
    %1670 = vmatpush1.bf16.xpose.msra.mxu0 0
    %1671 = vmatprep.subr.bf16.mxu0 0
    %1672 = vmatpush1.bf16.xpose.msra.mxu0 0
    %1673 = vmatprep.subr.bf16.mxu0 0
    %1674 = vmatpush1.bf16.xpose.msra.mxu0 0
    %1675 = vmatprep.subr.bf16.mxu0 0
    %1676 = vmatpush1.bf16.xpose.msra.mxu0 0
    %1677 = vmatprep.subr.bf16.mxu0 0
    %1678 = vmatpush1.bf16.xpose.msra.mxu0 0
    %1679 = vmatprep.mubr.bf16.mxu0 0
    %1680 = vmatmul.mubr.bf16.gmra.mrb[0].mxu0 %v1636
    %v1681 = vpop.f32.mrb[0].mxu0
    %v1682 = vadd.f32 %v362, %v1681
    %v1683 = vpop.f32.mrb[0].mxu0
    %v1684 = vpop.f32.mrb[0].mxu0
    %v1685 = vadd.f32 %v363, %v1684
    %v1686 = vpop.f32.mrb[0].mxu0
    %1687 = vmatprep.mubr.bf16.mxu0 0
    %1688 = vmatmul.mubr.bf16.gmra.mrb[0].mxu0 %v1639
    %v1689 = vpop.f32.mrb[0].mxu0
    %v1690 = vadd.f32 %v364, %v1689
    %v1691 = vpop.f32.mrb[0].mxu0
    %v1692 = vpop.f32.mrb[0].mxu0
    %v1693 = vadd.f32 %v365, %v1692
    %v1694 = vpop.f32.mrb[0].mxu0
    %1695 = vdwg.mxu0
    %v1696 = vsel %vm242, %v1682, -inf
    %1697 = vmax.xlane.f32.xlu0 %v1696
    %v1698 = vpop.xlane.xlu0 %1697
    %v1699 = vsel %vm242, %v1685, -inf
    %1700 = vmax.xlane.f32.xlu0 %v1699
    %v1701 = vpop.xlane.xlu0 %1700
    %v1702 = vsel %vm242, %v1690, -inf
    %1703 = vmax.xlane.f32.xlu0 %v1702
    %v1704 = vpop.xlane.xlu0 %1703
    %v1705 = vsel %vm242, %v1693, -inf
    %1706 = vmax.xlane.f32.xlu0 %v1705
    %v1707 = vpop.xlane.xlu0 %1706
    %v1708 = vsub.f32 %v1682, %v1698
    %v1709 = vsub.f32 %v1685, %v1701
    %v1710 = vsub.f32 %v1690, %v1704
    %v1711 = vsub.f32 %v1693, %v1707
    %v1712 = vmul.f32 %v1708, 1.442695
    %v1713 = vpow.pop %v1712
    %v1714 = vmul.f32 %v1709, 1.442695
    %v1715 = vpow.pop %v1714
    %v1716 = vmul.f32 %v1710, 1.442695
    %v1717 = vpow.pop %v1716
    %v1718 = vmul.f32 %v1711, 1.442695
    %v1719 = vpow.pop %v1718
    %v1720 = vsel %vm242, %v1713, 0.0
    %1721 = vadd.xlane.f32.xlu0 %v1720
    %v1722 = vpop.xlane.xlu0 %1721
    %v1723 = vsel %vm242, %v1715, 0.0
    %1724 = vadd.xlane.f32.xlu0 %v1723
    %v1725 = vpop.xlane.xlu0 %1724
    %v1726 = vsel %vm242, %v1717, 0.0
    %1727 = vadd.xlane.f32.xlu0 %v1726
    %v1728 = vpop.xlane.xlu0 %1727
    %v1729 = vsel %vm242, %v1719, 0.0
    %1730 = vadd.xlane.f32.xlu0 %v1729
    %v1731 = vpop.xlane.xlu0 %1730
    %v1732 = vrcp.pop %v1722
    %v1733 = vrcp.pop %v1725
    %v1734 = vrcp.pop %v1728
    %v1735 = vrcp.pop %v1731
    %v1736 = vmul.f32 %v1713, %v1732
    %v1737 = vmul.f32 %v1715, %v1733
    %v1738 = vmul.f32 %v1717, %v1734
    %v1739 = vmul.f32 %v1719, %v1735
    %v1740 = vpack.c.bf16 %v1737, %v1736
    %v1741 = vpack.c.bf16 %v1739, %v1738
    %1742 = vrot.lane.b32.xlu0 %v1451, 56
    %v1743 = vpop.permute.xlu0 %1742
    %1744 = vrot.lane.b32.xlu0 %v1452, 56
    %v1745 = vpop.permute.xlu0 %1744
    %v1749 = vsel %vm242, %v1740, 0
    %v1752 = vsel %vm242, %v1741, 0
    %1754 = vmatprep.subr.bf16.mxu0 0
    %1755 = vmatpush1.bf16.msra.mxu0 %v1743
    %1756 = vmatprep.subr.bf16.mxu0 0
    %1757 = vmatpush1.bf16.msra.mxu0 %v1745
    %1758 = vmatprep.subr.bf16.mxu0 0
    %1759 = vmatpush1.bf16.msra.mxu0 0
    %1760 = vmatprep.subr.bf16.mxu0 0
    %1761 = vmatpush1.bf16.msra.mxu0 0
    %1762 = vmatprep.subr.bf16.mxu0 0
    %1763 = vmatpush1.bf16.msra.mxu0 0
    %1764 = vmatprep.subr.bf16.mxu0 0
    %1765 = vmatpush1.bf16.msra.mxu0 0
    %1766 = vmatprep.subr.bf16.mxu0 0
    %1767 = vmatpush1.bf16.msra.mxu0 0
    %1768 = vmatprep.subr.bf16.mxu0 0
    %1769 = vmatpush1.bf16.msra.mxu0 0
    %1770 = vmatprep.subr.bf16.mxu0 0
    %1771 = vmatpush1.bf16.msra.mxu0 0
    %1772 = vmatprep.subr.bf16.mxu0 0
    %1773 = vmatpush1.bf16.msra.mxu0 0
    %1774 = vmatprep.subr.bf16.mxu0 0
    %1775 = vmatpush1.bf16.msra.mxu0 0
    %1776 = vmatprep.subr.bf16.mxu0 0
    %1777 = vmatpush1.bf16.msra.mxu0 0
    %1778 = vmatprep.subr.bf16.mxu0 0
    %1779 = vmatpush1.bf16.msra.mxu0 0
    %1780 = vmatprep.subr.bf16.mxu0 0
    %1781 = vmatpush1.bf16.msra.mxu0 0
    %1782 = vmatprep.subr.bf16.mxu0 0
    %1783 = vmatpush1.bf16.msra.mxu0 0
    %1784 = vmatprep.subr.bf16.mxu0 0
    %1785 = vmatpush1.bf16.msra.mxu0 0
    %1786 = vmatprep.mubr.bf16.mxu0 0
    %1787 = vmatmul.mubr.bf16.gmra.mrb[0].mxu0 %v1749
    %v1788 = vpop.f32.mrb[0].mxu0
    %v1789 = vadd.f32 0.0, %v1788
    %v1790 = vpop.f32.mrb[0].mxu0
    %v1791 = vpop.f32.mrb[0].mxu0
    %v1792 = vadd.f32 0.0, %v1791
    %v1793 = vpop.f32.mrb[0].mxu0
    %1794 = vmatprep.mubr.bf16.mxu0 0
    %1795 = vmatmul.mubr.bf16.gmra.mrb[0].mxu0 %v1752
    %v1796 = vpop.f32.mrb[0].mxu0
    %v1797 = vadd.f32 0.0, %v1796
    %v1798 = vpop.f32.mrb[0].mxu0
    %v1799 = vpop.f32.mrb[0].mxu0
    %v1800 = vadd.f32 0.0, %v1799
    %v1801 = vpop.f32.mrb[0].mxu0
    %1802 = vdwg.mxu0
    %1803 = vrot.lane.b32.xlu0 %v1451, 112
    %v1804 = vpop.permute.xlu0 %1803
    %1805 = vrot.lane.b32.xlu0 %v1452, 112
    %v1806 = vpop.permute.xlu0 %1805
    %1807 = vrot.lane.b32.xlu0 %v1451, 80
    %v1808 = vpop.permute.xlu0 %1807
    %1809 = vrot.lane.b32.xlu0 %v1452, 80
    %v1810 = vpop.permute.xlu0 %1809
    %v1812 = vsel %vm454, %v1804, 0
    %v1815 = vsel %vm454, %v1806, 0
    %v1818 = vsel %vm454, %v1808, 0
    %v1821 = vsel %vm454, %v1810, 0
    %1823 = vmatprep.subr.bf16.mxu0 0
    %1824 = vmatpush1.bf16.xpose.msra.mxu0 %v1818
    %1825 = vmatprep.subr.bf16.mxu0 0
    %1826 = vmatpush1.bf16.xpose.msra.mxu0 %v1821
    %1827 = vmatprep.subr.bf16.mxu0 0
    %1828 = vmatpush1.bf16.xpose.msra.mxu0 0
    %1829 = vmatprep.subr.bf16.mxu0 0
    %1830 = vmatpush1.bf16.xpose.msra.mxu0 0
    %1831 = vmatprep.subr.bf16.mxu0 0
    %1832 = vmatpush1.bf16.xpose.msra.mxu0 0
    %1833 = vmatprep.subr.bf16.mxu0 0
    %1834 = vmatpush1.bf16.xpose.msra.mxu0 0
    %1835 = vmatprep.subr.bf16.mxu0 0
    %1836 = vmatpush1.bf16.xpose.msra.mxu0 0
    %1837 = vmatprep.subr.bf16.mxu0 0
    %1838 = vmatpush1.bf16.xpose.msra.mxu0 0
    %1839 = vmatprep.subr.bf16.mxu0 0
    %1840 = vmatpush1.bf16.xpose.msra.mxu0 0
    %1841 = vmatprep.subr.bf16.mxu0 0
    %1842 = vmatpush1.bf16.xpose.msra.mxu0 0
    %1843 = vmatprep.subr.bf16.mxu0 0
    %1844 = vmatpush1.bf16.xpose.msra.mxu0 0
    %1845 = vmatprep.subr.bf16.mxu0 0
    %1846 = vmatpush1.bf16.xpose.msra.mxu0 0
    %1847 = vmatprep.subr.bf16.mxu0 0
    %1848 = vmatpush1.bf16.xpose.msra.mxu0 0
    %1849 = vmatprep.subr.bf16.mxu0 0
    %1850 = vmatpush1.bf16.xpose.msra.mxu0 0
    %1851 = vmatprep.subr.bf16.mxu0 0
    %1852 = vmatpush1.bf16.xpose.msra.mxu0 0
    %1853 = vmatprep.subr.bf16.mxu0 0
    %1854 = vmatpush1.bf16.xpose.msra.mxu0 0
    %1855 = vmatprep.mubr.bf16.mxu0 0
    %1856 = vmatmul.mubr.bf16.gmra.mrb[0].mxu0 %v1812
    %v1857 = vpop.f32.mrb[0].mxu0
    %v1858 = vadd.f32 %v362, %v1857
    %v1859 = vpop.f32.mrb[0].mxu0
    %v1860 = vpop.f32.mrb[0].mxu0
    %v1861 = vadd.f32 %v363, %v1860
    %v1862 = vpop.f32.mrb[0].mxu0
    %1863 = vmatprep.mubr.bf16.mxu0 0
    %1864 = vmatmul.mubr.bf16.gmra.mrb[0].mxu0 %v1815
    %v1865 = vpop.f32.mrb[0].mxu0
    %v1866 = vadd.f32 %v364, %v1865
    %v1867 = vpop.f32.mrb[0].mxu0
    %v1868 = vpop.f32.mrb[0].mxu0
    %v1869 = vadd.f32 %v365, %v1868
    %v1870 = vpop.f32.mrb[0].mxu0
    %1871 = vdwg.mxu0
    %v1872 = vsel %vm242, %v1858, -inf
    %1873 = vmax.xlane.f32.xlu0 %v1872
    %v1874 = vpop.xlane.xlu0 %1873
    %v1875 = vsel %vm242, %v1861, -inf
    %1876 = vmax.xlane.f32.xlu0 %v1875
    %v1877 = vpop.xlane.xlu0 %1876
    %v1878 = vsel %vm242, %v1866, -inf
    %1879 = vmax.xlane.f32.xlu0 %v1878
    %v1880 = vpop.xlane.xlu0 %1879
    %v1881 = vsel %vm242, %v1869, -inf
    %1882 = vmax.xlane.f32.xlu0 %v1881
    %v1883 = vpop.xlane.xlu0 %1882
    %v1884 = vsub.f32 %v1858, %v1874
    %v1885 = vsub.f32 %v1861, %v1877
    %v1886 = vsub.f32 %v1866, %v1880
    %v1887 = vsub.f32 %v1869, %v1883
    %v1888 = vmul.f32 %v1884, 1.442695
    %v1889 = vpow.pop %v1888
    %v1890 = vmul.f32 %v1885, 1.442695
    %v1891 = vpow.pop %v1890
    %v1892 = vmul.f32 %v1886, 1.442695
    %v1893 = vpow.pop %v1892
    %v1894 = vmul.f32 %v1887, 1.442695
    %v1895 = vpow.pop %v1894
    %v1896 = vsel %vm242, %v1889, 0.0
    %1897 = vadd.xlane.f32.xlu0 %v1896
    %v1898 = vpop.xlane.xlu0 %1897
    %v1899 = vsel %vm242, %v1891, 0.0
    %1900 = vadd.xlane.f32.xlu0 %v1899
    %v1901 = vpop.xlane.xlu0 %1900
    %v1902 = vsel %vm242, %v1893, 0.0
    %1903 = vadd.xlane.f32.xlu0 %v1902
    %v1904 = vpop.xlane.xlu0 %1903
    %v1905 = vsel %vm242, %v1895, 0.0
    %1906 = vadd.xlane.f32.xlu0 %v1905
    %v1907 = vpop.xlane.xlu0 %1906
    %v1908 = vrcp.pop %v1898
    %v1909 = vrcp.pop %v1901
    %v1910 = vrcp.pop %v1904
    %v1911 = vrcp.pop %v1907
    %v1912 = vmul.f32 %v1889, %v1908
    %v1913 = vmul.f32 %v1891, %v1909
    %v1914 = vmul.f32 %v1893, %v1910
    %v1915 = vmul.f32 %v1895, %v1911
    %v1916 = vpack.c.bf16 %v1913, %v1912
    %v1917 = vpack.c.bf16 %v1915, %v1914
    %1918 = vrot.lane.b32.xlu0 %v1451, 48
    %v1919 = vpop.permute.xlu0 %1918
    %1920 = vrot.lane.b32.xlu0 %v1452, 48
    %v1921 = vpop.permute.xlu0 %1920
    %v1925 = vsel %vm242, %v1916, 0
    %v1928 = vsel %vm242, %v1917, 0
    %1930 = vmatprep.subr.bf16.mxu0 0
    %1931 = vmatpush1.bf16.msra.mxu0 %v1919
    %1932 = vmatprep.subr.bf16.mxu0 0
    %1933 = vmatpush1.bf16.msra.mxu0 %v1921
    %1934 = vmatprep.subr.bf16.mxu0 0
    %1935 = vmatpush1.bf16.msra.mxu0 0
    %1936 = vmatprep.subr.bf16.mxu0 0
    %1937 = vmatpush1.bf16.msra.mxu0 0
    %1938 = vmatprep.subr.bf16.mxu0 0
    %1939 = vmatpush1.bf16.msra.mxu0 0
    %1940 = vmatprep.subr.bf16.mxu0 0
    %1941 = vmatpush1.bf16.msra.mxu0 0
    %1942 = vmatprep.subr.bf16.mxu0 0
    %1943 = vmatpush1.bf16.msra.mxu0 0
    %1944 = vmatprep.subr.bf16.mxu0 0
    %1945 = vmatpush1.bf16.msra.mxu0 0
    %1946 = vmatprep.subr.bf16.mxu0 0
    %1947 = vmatpush1.bf16.msra.mxu0 0
    %1948 = vmatprep.subr.bf16.mxu0 0
    %1949 = vmatpush1.bf16.msra.mxu0 0
    %1950 = vmatprep.subr.bf16.mxu0 0
    %1951 = vmatpush1.bf16.msra.mxu0 0
    %1952 = vmatprep.subr.bf16.mxu0 0
    %1953 = vmatpush1.bf16.msra.mxu0 0
    %1954 = vmatprep.subr.bf16.mxu0 0
    %1955 = vmatpush1.bf16.msra.mxu0 0
    %1956 = vmatprep.subr.bf16.mxu0 0
    %1957 = vmatpush1.bf16.msra.mxu0 0
    %1958 = vmatprep.subr.bf16.mxu0 0
    %1959 = vmatpush1.bf16.msra.mxu0 0
    %1960 = vmatprep.subr.bf16.mxu0 0
    %1961 = vmatpush1.bf16.msra.mxu0 0
    %1962 = vmatprep.mubr.bf16.mxu0 0
    %1963 = vmatmul.mubr.bf16.gmra.mrb[0].mxu0 %v1925
    %v1964 = vpop.f32.mrb[0].mxu0
    %v1965 = vadd.f32 0.0, %v1964
    %v1966 = vpop.f32.mrb[0].mxu0
    %v1967 = vpop.f32.mrb[0].mxu0
    %v1968 = vadd.f32 0.0, %v1967
    %v1969 = vpop.f32.mrb[0].mxu0
    %1970 = vmatprep.mubr.bf16.mxu0 0
    %1971 = vmatmul.mubr.bf16.gmra.mrb[0].mxu0 %v1928
    %v1972 = vpop.f32.mrb[0].mxu0
    %v1973 = vadd.f32 0.0, %v1972
    %v1974 = vpop.f32.mrb[0].mxu0
    %v1975 = vpop.f32.mrb[0].mxu0
    %v1976 = vadd.f32 0.0, %v1975
    %v1977 = vpop.f32.mrb[0].mxu0
    %1978 = vdwg.mxu0
    %1979 = vrot.lane.b32.xlu0 %v1451, 104
    %v1980 = vpop.permute.xlu0 %1979
    %1981 = vrot.lane.b32.xlu0 %v1452, 104
    %v1982 = vpop.permute.xlu0 %1981
    %1983 = vrot.lane.b32.xlu0 %v1451, 72
    %v1984 = vpop.permute.xlu0 %1983
    %1985 = vrot.lane.b32.xlu0 %v1452, 72
    %v1986 = vpop.permute.xlu0 %1985
    %v1988 = vsel %vm454, %v1980, 0
    %v1991 = vsel %vm454, %v1982, 0
    %v1994 = vsel %vm454, %v1984, 0
    %v1997 = vsel %vm454, %v1986, 0
    %1999 = vmatprep.subr.bf16.mxu0 0
    %2000 = vmatpush1.bf16.xpose.msra.mxu0 %v1994
    %2001 = vmatprep.subr.bf16.mxu0 0
    %2002 = vmatpush1.bf16.xpose.msra.mxu0 %v1997
    %2003 = vmatprep.subr.bf16.mxu0 0
    %2004 = vmatpush1.bf16.xpose.msra.mxu0 0
    %2005 = vmatprep.subr.bf16.mxu0 0
    %2006 = vmatpush1.bf16.xpose.msra.mxu0 0
    %2007 = vmatprep.subr.bf16.mxu0 0
    %2008 = vmatpush1.bf16.xpose.msra.mxu0 0
    %2009 = vmatprep.subr.bf16.mxu0 0
    %2010 = vmatpush1.bf16.xpose.msra.mxu0 0
    %2011 = vmatprep.subr.bf16.mxu0 0
    %2012 = vmatpush1.bf16.xpose.msra.mxu0 0
    %2013 = vmatprep.subr.bf16.mxu0 0
    %2014 = vmatpush1.bf16.xpose.msra.mxu0 0
    %2015 = vmatprep.subr.bf16.mxu0 0
    %2016 = vmatpush1.bf16.xpose.msra.mxu0 0
    %2017 = vmatprep.subr.bf16.mxu0 0
    %2018 = vmatpush1.bf16.xpose.msra.mxu0 0
    %2019 = vmatprep.subr.bf16.mxu0 0
    %2020 = vmatpush1.bf16.xpose.msra.mxu0 0
    %2021 = vmatprep.subr.bf16.mxu0 0
    %2022 = vmatpush1.bf16.xpose.msra.mxu0 0
    %2023 = vmatprep.subr.bf16.mxu0 0
    %2024 = vmatpush1.bf16.xpose.msra.mxu0 0
    %2025 = vmatprep.subr.bf16.mxu0 0
    %2026 = vmatpush1.bf16.xpose.msra.mxu0 0
    %2027 = vmatprep.subr.bf16.mxu0 0
    %2028 = vmatpush1.bf16.xpose.msra.mxu0 0
    %2029 = vmatprep.subr.bf16.mxu0 0
    %2030 = vmatpush1.bf16.xpose.msra.mxu0 0
    %2031 = vmatprep.mubr.bf16.mxu0 0
    %2032 = vmatmul.mubr.bf16.gmra.mrb[0].mxu0 %v1988
    %v2033 = vpop.f32.mrb[0].mxu0
    %v2034 = vadd.f32 %v362, %v2033
    %v2035 = vpop.f32.mrb[0].mxu0
    %v2036 = vpop.f32.mrb[0].mxu0
    %v2037 = vadd.f32 %v363, %v2036
    %v2038 = vpop.f32.mrb[0].mxu0
    %2039 = vmatprep.mubr.bf16.mxu0 0
    %2040 = vmatmul.mubr.bf16.gmra.mrb[0].mxu0 %v1991
    %v2041 = vpop.f32.mrb[0].mxu0
    %v2042 = vadd.f32 %v364, %v2041
    %v2043 = vpop.f32.mrb[0].mxu0
    %v2044 = vpop.f32.mrb[0].mxu0
    %v2045 = vadd.f32 %v365, %v2044
    %v2046 = vpop.f32.mrb[0].mxu0
    %2047 = vdwg.mxu0
    %v2048 = vsel %vm242, %v2034, -inf
    %2049 = vmax.xlane.f32.xlu0 %v2048
    %v2050 = vpop.xlane.xlu0 %2049
    %v2051 = vsel %vm242, %v2037, -inf
    %2052 = vmax.xlane.f32.xlu0 %v2051
    %v2053 = vpop.xlane.xlu0 %2052
    %v2054 = vsel %vm242, %v2042, -inf
    %2055 = vmax.xlane.f32.xlu0 %v2054
    %v2056 = vpop.xlane.xlu0 %2055
    %v2057 = vsel %vm242, %v2045, -inf
    %2058 = vmax.xlane.f32.xlu0 %v2057
    %v2059 = vpop.xlane.xlu0 %2058
    %v2060 = vsub.f32 %v2034, %v2050
    %v2061 = vsub.f32 %v2037, %v2053
    %v2062 = vsub.f32 %v2042, %v2056
    %v2063 = vsub.f32 %v2045, %v2059
    %v2064 = vmul.f32 %v2060, 1.442695
    %v2065 = vpow.pop %v2064
    %v2066 = vmul.f32 %v2061, 1.442695
    %v2067 = vpow.pop %v2066
    %v2068 = vmul.f32 %v2062, 1.442695
    %v2069 = vpow.pop %v2068
    %v2070 = vmul.f32 %v2063, 1.442695
    %v2071 = vpow.pop %v2070
    %v2072 = vsel %vm242, %v2065, 0.0
    %2073 = vadd.xlane.f32.xlu0 %v2072
    %v2074 = vpop.xlane.xlu0 %2073
    %v2075 = vsel %vm242, %v2067, 0.0
    %2076 = vadd.xlane.f32.xlu0 %v2075
    %v2077 = vpop.xlane.xlu0 %2076
    %v2078 = vsel %vm242, %v2069, 0.0
    %2079 = vadd.xlane.f32.xlu0 %v2078
    %v2080 = vpop.xlane.xlu0 %2079
    %v2081 = vsel %vm242, %v2071, 0.0
    %2082 = vadd.xlane.f32.xlu0 %v2081
    %v2083 = vpop.xlane.xlu0 %2082
    %v2084 = vrcp.pop %v2074
    %v2085 = vrcp.pop %v2077
    %v2086 = vrcp.pop %v2080
    %v2087 = vrcp.pop %v2083
    %v2088 = vmul.f32 %v2065, %v2084
    %v2089 = vmul.f32 %v2067, %v2085
    %v2090 = vmul.f32 %v2069, %v2086
    %v2091 = vmul.f32 %v2071, %v2087
    %v2092 = vpack.c.bf16 %v2089, %v2088
    %v2093 = vpack.c.bf16 %v2091, %v2090
    %2094 = vrot.lane.b32.xlu0 %v1451, 40
    %v2095 = vpop.permute.xlu0 %2094
    %2096 = vrot.lane.b32.xlu0 %v1452, 40
    %v2097 = vpop.permute.xlu0 %2096
    %v2101 = vsel %vm242, %v2092, 0
    %v2104 = vsel %vm242, %v2093, 0
    %2106 = vmatprep.subr.bf16.mxu0 0
    %2107 = vmatpush1.bf16.msra.mxu0 %v2095
    %2108 = vmatprep.subr.bf16.mxu0 0
    %2109 = vmatpush1.bf16.msra.mxu0 %v2097
    %2110 = vmatprep.subr.bf16.mxu0 0
    %2111 = vmatpush1.bf16.msra.mxu0 0
    %2112 = vmatprep.subr.bf16.mxu0 0
    %2113 = vmatpush1.bf16.msra.mxu0 0
    %2114 = vmatprep.subr.bf16.mxu0 0
    %2115 = vmatpush1.bf16.msra.mxu0 0
    %2116 = vmatprep.subr.bf16.mxu0 0
    %2117 = vmatpush1.bf16.msra.mxu0 0
    %2118 = vmatprep.subr.bf16.mxu0 0
    %2119 = vmatpush1.bf16.msra.mxu0 0
    %2120 = vmatprep.subr.bf16.mxu0 0
    %2121 = vmatpush1.bf16.msra.mxu0 0
    %2122 = vmatprep.subr.bf16.mxu0 0
    %2123 = vmatpush1.bf16.msra.mxu0 0
    %2124 = vmatprep.subr.bf16.mxu0 0
    %2125 = vmatpush1.bf16.msra.mxu0 0
    %2126 = vmatprep.subr.bf16.mxu0 0
    %2127 = vmatpush1.bf16.msra.mxu0 0
    %2128 = vmatprep.subr.bf16.mxu0 0
    %2129 = vmatpush1.bf16.msra.mxu0 0
    %2130 = vmatprep.subr.bf16.mxu0 0
    %2131 = vmatpush1.bf16.msra.mxu0 0
    %2132 = vmatprep.subr.bf16.mxu0 0
    %2133 = vmatpush1.bf16.msra.mxu0 0
    %2134 = vmatprep.subr.bf16.mxu0 0
    %2135 = vmatpush1.bf16.msra.mxu0 0
    %2136 = vmatprep.subr.bf16.mxu0 0
    %2137 = vmatpush1.bf16.msra.mxu0 0
    %2138 = vmatprep.mubr.bf16.mxu0 0
    %2139 = vmatmul.mubr.bf16.gmra.mrb[0].mxu0 %v2101
    %v2140 = vpop.f32.mrb[0].mxu0
    %v2141 = vadd.f32 0.0, %v2140
    %v2142 = vpop.f32.mrb[0].mxu0
    %v2143 = vpop.f32.mrb[0].mxu0
    %v2144 = vadd.f32 0.0, %v2143
    %v2145 = vpop.f32.mrb[0].mxu0
    %2146 = vmatprep.mubr.bf16.mxu0 0
    %2147 = vmatmul.mubr.bf16.gmra.mrb[0].mxu0 %v2104
    %v2148 = vpop.f32.mrb[0].mxu0
    %v2149 = vadd.f32 0.0, %v2148
    %v2150 = vpop.f32.mrb[0].mxu0
    %v2151 = vpop.f32.mrb[0].mxu0
    %v2152 = vadd.f32 0.0, %v2151
    %v2153 = vpop.f32.mrb[0].mxu0
    %2154 = vdwg.mxu0
    %2159 = vrot.lane.b32.xlu0 %v1789, 8
    %v2160 = vpop.permute.xlu0 %2159
    %2161 = vrot.lane.b32.xlu0 %v1792, 8
    %v2162 = vpop.permute.xlu0 %2161
    %2163 = vrot.lane.b32.xlu0 %v1797, 8
    %v2164 = vpop.permute.xlu0 %2163
    %2165 = vrot.lane.b32.xlu0 %v1800, 8
    %v2166 = vpop.permute.xlu0 %2165
    %2175 = vrot.lane.b32.xlu0 %v1965, 16
    %v2176 = vpop.permute.xlu0 %2175
    %2177 = vrot.lane.b32.xlu0 %v1968, 16
    %v2178 = vpop.permute.xlu0 %2177
    %2179 = vrot.lane.b32.xlu0 %v1973, 16
    %v2180 = vpop.permute.xlu0 %2179
    %2181 = vrot.lane.b32.xlu0 %v1976, 16
    %v2182 = vpop.permute.xlu0 %2181
    %2191 = vrot.lane.b32.xlu0 %v2141, 24
    %v2192 = vpop.permute.xlu0 %2191
    %2193 = vrot.lane.b32.xlu0 %v2144, 24
    %v2194 = vpop.permute.xlu0 %2193
    %2195 = vrot.lane.b32.xlu0 %v2149, 24
    %v2196 = vpop.permute.xlu0 %2195
    %2197 = vrot.lane.b32.xlu0 %v2152, 24
    %v2198 = vpop.permute.xlu0 %2197
    %v2203 = vsel %vm454, %v1613, %v2160
    %v2204 = vsel %vm454, %v1616, %v2162
    %v2205 = vsel %vm454, %v1621, %v2164
    %v2206 = vsel %vm454, %v1624, %v2166
    %v2207 = vsel %vm71, %v2203, %v2176
    %v2208 = vsel %vm71, %v2204, %v2178
    %v2209 = vsel %vm71, %v2205, %v2180
    %v2210 = vsel %vm71, %v2206, %v2182
    %v2211 = vsel %vm1207, %v2207, %v2192
    %v2212 = vsel %vm1207, %v2208, %v2194
    %v2213 = vsel %vm1207, %v2209, %v2196
    %v2214 = vsel %vm1207, %v2210, %v2198
    %v2215 = vpack.c.bf16 %v2212, %v2211
    %v2216 = vpack.c.bf16 %v2214, %v2213
    %s2217 = scalar_lea.vmem %s7, 16
    %v2218 = vld [vmem:[%s2217] sm:$0xf]
    %v2219 = vld [vmem:[%s2217 + $0x4] sm:$0xf]
    %v2220 = vld [vmem:[%s2217 + $0x8] sm:$0xf]
    %v2221 = vld [vmem:[%s2217 + $0xc] sm:$0xf]
    %s2222 = scalar_lea.vmem [#allocation4], 1
    %v2223 = vld [vmem:[%s2222] sm:$0x1]
    %v2225 = vlaneseq
    %v2226 = vshrl.u32 %v2225, 7
    %v2227 = vsub.s32 0, %v2226
    %v2228 = vrot.slane %v2223, %v2227
    %v2234 = vunpack.c.l.b16 %v2218
    %v2235 = vunpack.c.l.b16 %v2219
    %v2236 = vunpack.c.l.b16 %v2220
    %v2237 = vunpack.c.l.b16 %v2221
    %v2238 = vpack.c.b16 %v2235, %v2234
    %v2239 = vpack.c.b16 %v2237, %v2236
    %v2243 = vsel %vm242, %v2215, 0
    %v2246 = vsel %vm242, %v2216, 0
    %2248 = vmatprep.subr.bf16.mxu0 0
    %2249 = vmatpush1.bf16.msra.mxu0 %v2238
    %2250 = vmatprep.subr.bf16.mxu0 0
    %2251 = vmatpush1.bf16.msra.mxu0 %v2239
    %2252 = vmatprep.subr.bf16.mxu0 0
    %2253 = vmatpush1.bf16.msra.mxu0 0
    %2254 = vmatprep.subr.bf16.mxu0 0
    %2255 = vmatpush1.bf16.msra.mxu0 0
    %2256 = vmatprep.subr.bf16.mxu0 0
    %2257 = vmatpush1.bf16.msra.mxu0 0
    %2258 = vmatprep.subr.bf16.mxu0 0
    %2259 = vmatpush1.bf16.msra.mxu0 0
    %2260 = vmatprep.subr.bf16.mxu0 0
    %2261 = vmatpush1.bf16.msra.mxu0 0
    %2262 = vmatprep.subr.bf16.mxu0 0
    %2263 = vmatpush1.bf16.msra.mxu0 0
    %2264 = vmatprep.subr.bf16.mxu0 0
    %2265 = vmatpush1.bf16.msra.mxu0 0
    %2266 = vmatprep.subr.bf16.mxu0 0
    %2267 = vmatpush1.bf16.msra.mxu0 0
    %2268 = vmatprep.subr.bf16.mxu0 0
    %2269 = vmatpush1.bf16.msra.mxu0 0
    %2270 = vmatprep.subr.bf16.mxu0 0
    %2271 = vmatpush1.bf16.msra.mxu0 0
    %2272 = vmatprep.subr.bf16.mxu0 0
    %2273 = vmatpush1.bf16.msra.mxu0 0
    %2274 = vmatprep.subr.bf16.mxu0 0
    %2275 = vmatpush1.bf16.msra.mxu0 0
    %2276 = vmatprep.subr.bf16.mxu0 0
    %2277 = vmatpush1.bf16.msra.mxu0 0
    %2278 = vmatprep.subr.bf16.mxu0 0
    %2279 = vmatpush1.bf16.msra.mxu0 0
    %2280 = vmatprep.mubr.bf16.mxu0 0
    %2281 = vmatmul.mubr.bf16.gmra.mrb[0].mxu0 %v2243
    %v2282 = vpop.f32.mrb[0].mxu0
    %v2283 = vadd.f32 %v2228, %v2282
    %v2284 = vpop.f32.mrb[0].mxu0
    %v2285 = vpop.f32.mrb[0].mxu0
    %v2286 = vadd.f32 %v2228, %v2285
    %v2287 = vpop.f32.mrb[0].mxu0
    %2288 = vmatprep.mubr.bf16.mxu0 0
    %2289 = vmatmul.mubr.bf16.gmra.mrb[0].mxu0 %v2246
    %v2290 = vpop.f32.mrb[0].mxu0
    %v2291 = vadd.f32 %v2228, %v2290
    %v2292 = vpop.f32.mrb[0].mxu0
    %v2293 = vpop.f32.mrb[0].mxu0
    %v2294 = vadd.f32 %v2228, %v2293
    %v2295 = vpop.f32.mrb[0].mxu0
    %2296 = vdwg.mxu0
    %v2297 = vadd.f32 %v2283, %v1355
    %v2298 = vadd.f32 %v2286, %v1358
    %v2299 = vadd.f32 %v2291, %v1363
    %v2300 = vadd.f32 %v2294, %v1366
    %v2301 = vpack.c.bf16 %v2298, %v2297
    %v2302 = vpack.c.bf16 %v2300, %v2299
    %s2303 = scalar_lea.vmem %s9, 16
    %v2304 = vld [vmem:[%s2303] sm:$0xf]
    %v2305 = vld [vmem:[%s2303 + $0x4] sm:$0xf]
    %v2306 = vld [vmem:[%s2303 + $0x8] sm:$0xf]
    %v2307 = vld [vmem:[%s2303 + $0xc] sm:$0xf]
    %v2312 = vunpack.c.l.b16 %v2304
    %v2313 = vunpack.c.l.b16 %v2305
    %v2314 = vunpack.c.l.b16 %v2306
    %v2315 = vunpack.c.l.b16 %v2307
    %v2316 = vpack.c.b16 %v2313, %v2312
    %v2317 = vpack.c.b16 %v2315, %v2314
    %v2321 = vsel %vm242, %v2301, 0
    %v2324 = vsel %vm242, %v2302, 0
    %2326 = vmatprep.subr.bf16.mxu0 0
    %2327 = vmatpush1.bf16.msra.mxu0 %v2316
    %2328 = vmatprep.subr.bf16.mxu0 0
    %2329 = vmatpush1.bf16.msra.mxu0 %v2317
    %2330 = vmatprep.subr.bf16.mxu0 0
    %2331 = vmatpush1.bf16.msra.mxu0 0
    %2332 = vmatprep.subr.bf16.mxu0 0
    %2333 = vmatpush1.bf16.msra.mxu0 0
    %2334 = vmatprep.subr.bf16.mxu0 0
    %2335 = vmatpush1.bf16.msra.mxu0 0
    %2336 = vmatprep.subr.bf16.mxu0 0
    %2337 = vmatpush1.bf16.msra.mxu0 0
    %2338 = vmatprep.subr.bf16.mxu0 0
    %2339 = vmatpush1.bf16.msra.mxu0 0
    %2340 = vmatprep.subr.bf16.mxu0 0
    %2341 = vmatpush1.bf16.msra.mxu0 0
    %2342 = vmatprep.subr.bf16.mxu0 0
    %2343 = vmatpush1.bf16.msra.mxu0 0
    %2344 = vmatprep.subr.bf16.mxu0 0
    %2345 = vmatpush1.bf16.msra.mxu0 0
    %2346 = vmatprep.subr.bf16.mxu0 0
    %2347 = vmatpush1.bf16.msra.mxu0 0
    %2348 = vmatprep.subr.bf16.mxu0 0
    %2349 = vmatpush1.bf16.msra.mxu0 0
    %2350 = vmatprep.subr.bf16.mxu0 0
    %2351 = vmatpush1.bf16.msra.mxu0 0
    %2352 = vmatprep.subr.bf16.mxu0 0
    %2353 = vmatpush1.bf16.msra.mxu0 0
    %2354 = vmatprep.subr.bf16.mxu0 0
    %2355 = vmatpush1.bf16.msra.mxu0 0
    %2356 = vmatprep.subr.bf16.mxu0 0
    %2357 = vmatpush1.bf16.msra.mxu0 0
    %2358 = vmatprep.mubr.bf16.mxu0 0
    %2359 = vmatmul.mubr.bf16.gmra.mrb[0].mxu0 %v2321
    %v2360 = vpop.f32.mrb[0].mxu0
    %v2361 = vadd.f32 %v2297, %v2360
    %v2362 = vpop.f32.mrb[0].mxu0
    %v2363 = vpop.f32.mrb[0].mxu0
    %v2364 = vadd.f32 %v2298, %v2363
    %v2365 = vpop.f32.mrb[0].mxu0
    %2366 = vmatprep.mubr.bf16.mxu0 0
    %2367 = vmatmul.mubr.bf16.gmra.mrb[0].mxu0 %v2324
    %v2368 = vpop.f32.mrb[0].mxu0
    %v2369 = vadd.f32 %v2299, %v2368
    %v2370 = vpop.f32.mrb[0].mxu0
    %v2371 = vpop.f32.mrb[0].mxu0
    %v2372 = vadd.f32 %v2300, %v2371
    %v2373 = vpop.f32.mrb[0].mxu0
    %2374 = vdwg.mxu0
    %2375 = vxpose.xlu0.b32.start [1/16] %v2361, 128
    %2376 = vxpose.xlu0.b32.cont [2/16] %v2364, 128
    %2377 = vxpose.xlu0.b32.cont [3/16] %v2369, 128
    %2378 = vxpose.xlu0.b32.cont [4/16] %v2372, 128
    %2379 = vxpose.xlu0.b32.cont [5/16] 0.0, 128
    %2380 = vxpose.xlu0.b32.cont [6/16] 0.0, 128
    %2381 = vxpose.xlu0.b32.cont [7/16] 0.0, 128
    %2382 = vxpose.xlu0.b32.cont [8/16] 0.0, 128
    %2383 = vxpose.xlu0.b32.cont [9/16] 0.0, 128
    %2384 = vxpose.xlu0.b32.cont [10/16] 0.0, 128
    %2385 = vxpose.xlu0.b32.cont [11/16] 0.0, 128
    %2386 = vxpose.xlu0.b32.cont [12/16] 0.0, 128
    %2387 = vxpose.xlu0.b32.cont [13/16] 0.0, 128
    %2388 = vxpose.xlu0.b32.cont [14/16] 0.0, 128
    %2389 = vxpose.xlu0.b32.cont [15/16] 0.0, 128
    %2390 = vxpose.xlu0.b32.end [16/16] 0.0, 128
    %v2391 = vpop.trf.xlu0
    %v2392 = vpop.trf.xlu0
    %v2393 = vpop.trf.xlu0
    %v2394 = vpop.trf.xlu0
    %v2395 = vpop.trf.xlu0
    %v2396 = vpop.trf.xlu0
    %v2397 = vpop.trf.xlu0
    %v2398 = vpop.trf.xlu0
    %v2399 = vpop.trf.xlu0
    %v2400 = vpop.trf.xlu0
    %v2401 = vpop.trf.xlu0
    %v2402 = vpop.trf.xlu0
    %v2403 = vpop.trf.xlu0
    %v2404 = vpop.trf.xlu0
    %v2405 = vpop.trf.xlu0
    %v2406 = vpop.trf.xlu0
    %2407 = vst.msk [vmem:[%s10] sm:$0xff] %vm71, %v2391
    %2408 = vst.msk [vmem:[%s10 + $0x8] sm:$0xff] %vm71, %v2392
    %2409 = vst.msk [vmem:[%s10 + $0x10] sm:$0xff] %vm71, %v2393
    %2410 = vst.msk [vmem:[%s10 + $0x18] sm:$0xff] %vm71, %v2394
    %2415 = vrot.lane.b32.xlu0 %v2391, 112
    %v2416 = vpop.permute.xlu0 %2415
    %2417 = vrot.lane.b32.xlu0 %v2392, 112
    %v2418 = vpop.permute.xlu0 %2417
    %2419 = vrot.lane.b32.xlu0 %v2393, 112
    %v2420 = vpop.permute.xlu0 %2419
    %2421 = vrot.lane.b32.xlu0 %v2394, 112
    %v2422 = vpop.permute.xlu0 %2421
    %s2427 = scalar_lea.vmem %s10, 32
    %2428 = vst.msk [vmem:[%s2427] sm:$0xff] %vm71, %v2416
    %2429 = vst.msk [vmem:[%s2427 + $0x8] sm:$0xff] %vm71, %v2418
    %2430 = vst.msk [vmem:[%s2427 + $0x10] sm:$0xff] %vm71, %v2420
    %2431 = vst.msk [vmem:[%s2427 + $0x18] sm:$0xff] %vm71, %v2422
    // Predicated region
    $region50: #{transformer_block.1} parent=1 // pred_check
      _
    $region51: #{transformer_block.1} parent=1 // pred_check_branch
      %2433 = sbr.rel (0) target = $region53
    $region52: #{transformer_block.1} parent=1 // pred_region
      _
    $region53: #{transformer_block.1} parent=1 // pred_fallthru
      _
    // Predicated region
    $region54: #{transformer_block.1} parent=1 // pred_check
      _
    $region55: #{transformer_block.1} parent=1 // pred_check_branch
      %2435 = sbr.rel (0) target = $region57
    $region56: #{transformer_block.1} parent=1 // pred_region
      _
    $region57: #{transformer_block.1} parent=1 // pred_fallthru
      _
    %2436 = vsyncpa [#allocation3], 1
    %2437 = vsyncpa [#allocation5], 1

</llo_original>
